<compile_context>
chip_gen: v6e
topology: v6e:2x2x1
jax: 0.10.0
libtpu: 0.0.40
codegen_flags: <defaults>
</compile_context>

<pallas_src>
import math
import functools

import jax
import jax.numpy as jnp
from jax import lax
from jax.experimental import pallas as pl
from jax.experimental.pallas import tpu as pltpu


def _mhsa_kernel(x_ref, wqkv_ref, bqkv_ref, wo_ref, bo_ref, o_ref,
                 qkv_scr, q_scr, k_scr, v_scr, attn_scr,
                 *, num_heads, head_dim, q_tile):
    """One grid step handles one batch element.

    x_ref    : (1, T, D)   VMEM bf16
    wqkv_ref : (D, 3D)     VMEM bf16   ([in, out]; Wq pre-scaled by 1/sqrt(Dh))
    bqkv_ref : (1, 3D)     VMEM f32    (bq pre-scaled)
    wo_ref   : (D, D)      VMEM bf16   ([in, out])
    bo_ref   : (1, D)      VMEM f32
    o_ref    : (1, T, D)   VMEM f32
    qkv_scr  : (T, 3D)     VMEM bf16 scratch   fused [Q_scaled | K | V], lane-major
    q_scr    : (H, T, Dh)  VMEM bf16 scratch   head-major Q
    k_scr    : (H, T, Dh)  VMEM bf16 scratch   head-major K
    v_scr    : (H, T, Dh)  VMEM bf16 scratch   head-major V
    attn_scr : (T, D)      VMEM bf16 scratch   concatenated per-head outputs
    """
    H, Dh = num_heads, head_dim
    D = H * Dh
    T = x_ref.shape[1]
    nqt = T // q_tile

    # --- 1) Fused QKV projection: one (T, D) x (D, 3D) MXU matmul, f32 accumulate
    #        + f32 bias, then a single cast into the bf16 scratch.
    qkv = jnp.dot(x_ref[0], wqkv_ref[...],
                  preferred_element_type=jnp.float32) + bqkv_ref[...]   # (T, 3D) f32
    qkv_scr[...] = qkv.astype(jnp.bfloat16)

    # --- 2) Head-major re-layout (once per batch element): 3H small (T, Dh) slab
    #        copies so the attention below is ONE leading-batch dot_general over
    #        all heads (no per-head matmuls, no explicit K transpose).
    for h in range(H):
        q_scr[h, :, :] = qkv_scr[:, h * Dh:(h + 1) * Dh]
        k_scr[h, :, :] = qkv_scr[:, D + h * Dh:D + (h + 1) * Dh]
        v_scr[h, :, :] = qkv_scr[:, 2 * D + h * Dh:2 * D + (h + 1) * Dh]

    # --- 3) Attention, tiled over the query dimension so the (H, tq, T) f32
    #        logits/softmax temporaries fit in vregs instead of spilling.
    def attend_tile(qs):
        q = q_scr[:, pl.ds(qs, q_tile), :]                  # (H, tq, Dh) bf16 (scale folded in)
        k = k_scr[...]                                      # (H, T,  Dh) bf16
        v = v_scr[...]                                      # (H, T,  Dh) bf16

        # Batched QK^T over all heads, contracting d — no .T on K.
        s = jnp.einsum('hqd,hkd->hqk', q, k,
                       preferred_element_type=jnp.float32)  # (H, tq, T) f32

        # Max-stabilized softmax in f32; divide goes to the EUP slot.
        m = jnp.max(s, axis=-1, keepdims=True)
        e = jnp.exp(s - m)
        denom = jnp.sum(e, axis=-1, keepdims=True)
        p = e * pl.reciprocal(denom, approx=True)
        # TODO(synk): attn_drop skipped (inference-mode dropout is identity).

        o = jnp.einsum('hqk,hkd->hqd', p.astype(jnp.bfloat16), v,
                       preferred_element_type=jnp.float32)  # (H, tq, Dh) f32

        # Head-major -> feature-major crossing (== transpose(1,2).view(T, H*Dh)):
        # H narrow lane stores per tile; cheap relative to the matmuls and avoids
        # an in-kernel reshape/relayout of the batched result.
        for h in range(H):
            attn_scr[pl.ds(qs, q_tile), h * Dh:(h + 1) * Dh] = o[h].astype(jnp.bfloat16)

    if nqt == 1:
        attend_tile(0)
    else:
        def body(i, carry):
            attend_tile(pl.multiple_of(i * q_tile, q_tile))
            return carry
        lax.fori_loop(0, nqt, body, 0)

    # --- 4) Output projection: one big (T, D) x (D, D) MXU matmul, f32 bias add,
    #        single unmasked lane-dense (T, D) store.
    out = jnp.dot(attn_scr[...], wo_ref[...],
                  preferred_element_type=jnp.float32) + bo_ref[...]     # (T, D) f32
    # TODO(synk): proj_drop skipped (inference-mode dropout is identity).
    o_ref[0] = out.astype(o_ref.dtype)


def _pick_q_tile(T):
    for cand in (256, 128):
        if T % cand == 0:
            return cand
    # TODO(synk): for long sequences not divisible by 128, pad T to a multiple of
    # 128 in the wrapper instead of falling back to a single full-T tile.
    return T


def mhsa_forward(x, params, *, num_heads, q_tile=None):
    """x: (B, T, D) float32. params: dict of Wq,bq,Wk,bk,Wv,bv,Wo,bo (PyTorch layout)."""
    B, T, D = x.shape
    assert D % num_heads == 0
    Dh = D // num_heads
    scale = 1.0 / math.sqrt(Dh)
    out_dtype = x.dtype
    if q_tile is None:
        q_tile = _pick_q_tile(T)
    assert T % q_tile == 0

    # Host-side prep: fold attention scale into Wq/bq, transpose to [in, out],
    # fuse QKV into a single (D, 3D) weight, store matmul weights in bf16.
    wqkv = jnp.concatenate(
        [(params["Wq"] * scale).T, params["Wk"].T, params["Wv"].T], axis=1
    ).astype(jnp.bfloat16)                                              # (D, 3D)
    bqkv = jnp.concatenate(
        [params["bq"] * scale, params["bk"], params["bv"]]
    ).reshape(1, 3 * D).astype(jnp.float32)                             # (1, 3D)
    wo = params["Wo"].T.astype(jnp.bfloat16)                            # (D, D)
    bo = params["bo"].reshape(1, D).astype(jnp.float32)                 # (1, D)

    # Activations DMA'd in bf16 (half HBM->VMEM traffic); accumulation stays f32.
    x_bf16 = x.astype(jnp.bfloat16)

    kernel = functools.partial(_mhsa_kernel, num_heads=num_heads, head_dim=Dh,
                               q_tile=q_tile)

    x_spec = pl.BlockSpec((1, T, D), lambda b: (b, 0, 0))
    # TODO(synk): on v7x, mark the constant weight specs with
    # pipeline_mode=pl.Buffered(1) (their index_map never changes) to reclaim the
    # double-buffer VMEM, and add a second "parallel" grid axis over q-tiles when
    # B is small so both TensorCores stay busy.
    wqkv_spec = pl.BlockSpec((D, 3 * D), lambda b: (0, 0))
    bqkv_spec = pl.BlockSpec((1, 3 * D), lambda b: (0, 0))
    wo_spec = pl.BlockSpec((D, D), lambda b: (0, 0))
    bo_spec = pl.BlockSpec((1, D), lambda b: (0, 0))

    return pl.pallas_call(
        kernel,
        out_shape=jax.ShapeDtypeStruct((B, T, D), out_dtype),
        grid_spec=pltpu.PrefetchScalarGridSpec(
            num_scalar_prefetch=0,
            grid=(B,),
            in_specs=[x_spec, wqkv_spec, bqkv_spec, wo_spec, bo_spec],
            out_specs=x_spec,
            scratch_shapes=[
                pltpu.VMEM((T, 3 * D), jnp.bfloat16),           # fused QKV (lane-major)
                pltpu.VMEM((num_heads, T, Dh), jnp.bfloat16),   # Q, head-major
                pltpu.VMEM((num_heads, T, Dh), jnp.bfloat16),   # K, head-major
                pltpu.VMEM((num_heads, T, Dh), jnp.bfloat16),   # V, head-major
                pltpu.VMEM((T, D), jnp.bfloat16),               # concatenated head outputs
            ],
        ),
        compiler_params=pltpu.CompilerParams(
            dimension_semantics=("parallel",),
            vmem_limit_bytes=64 * 1024 * 1024,
        ),
    )(x_bf16, wqkv, bqkv, wo, bo)


def _reference(x, params, num_heads):
    """Plain-JAX f32 reference mirroring the PyTorch forward (eval mode)."""
    B, T, D = x.shape
    Dh = D // num_heads

    def lin(h, W, b):
        return h @ W.T + b

    q = lin(x, params["Wq"], params["bq"]).reshape(B, T, num_heads, Dh).transpose(0, 2, 1, 3)
    k = lin(x, params["Wk"], params["bk"]).reshape(B, T, num_heads, Dh).transpose(0, 2, 1, 3)
    v = lin(x, params["Wv"], params["bv"]).reshape(B, T, num_heads, Dh).transpose(0, 2, 1, 3)
    w = jnp.einsum("bhtd,bhsd->bhts", q, k) / math.sqrt(Dh)
    p = jax.nn.softmax(w, axis=-1)
    a = jnp.einsum("bhts,bhsd->bhtd", p, v)
    a = a.transpose(0, 2, 1, 3).reshape(B, T, D)
    return lin(a, params["Wo"], params["bo"])


def _init_params(key, embed_dim):
    """Deterministic PyTorch-Linear-style init: U(-1/sqrt(fan_in), +1/sqrt(fan_in))."""
    bound = 1.0 / math.sqrt(embed_dim)
    keys = jax.random.split(key, 8)
    names = ["Wq", "bq", "Wk", "bk", "Wv", "bv", "Wo", "bo"]
    params = {}
    for i, name in enumerate(names):
        shape = (embed_dim, embed_dim) if name.startswith("W") else (embed_dim,)
        params[name] = jax.random.uniform(keys[i], shape, jnp.float32, -bound, bound)
    return params


if __name__ == "__main__":
    # Small but TPU-friendly sizes (per review: D a multiple of 128, T a multiple
    # of 8) so the MXU/VPU see properly shaped tiles even in this smoke test.
    B, T, D = 2, 16, 128
    num_heads = 4
    drop_p = 0.0  # dropout is identity in eval / p=0

    key = jax.random.PRNGKey(0)
    kx, kp = jax.random.split(key)
    x = jax.random.normal(kx, (B, T, D), jnp.float32)
    params = _init_params(kp, D)

    out = mhsa_forward(x, params, num_heads=num_heads)
    out = jax.block_until_ready(out)

    ref = _reference(x, params, num_heads)
    assert out.shape == (B, T, D)
    # bf16 MXU operands with f32 accumulation (+ approx softmax reciprocal)
    # -> slightly looser tolerance vs the f32 reference.
    assert jnp.allclose(out, ref, atol=5e-2, rtol=5e-2), "mismatch vs reference"

    print("KERNEL_OK")
</pallas_src>

<mosaic_0001>
module attributes {stable_mosaic.version = 11 : i64} {
  func.func @_mhsa_kernel(%arg0: i32, %arg1: memref<1x16x128xbf16, #tpu.memory_space<vmem>>, %arg2: memref<128x384xbf16, #tpu.memory_space<vmem>>, %arg3: memref<1x384xf32, #tpu.memory_space<vmem>>, %arg4: memref<128x128xbf16, #tpu.memory_space<vmem>>, %arg5: memref<1x128xf32, #tpu.memory_space<vmem>>, %arg6: memref<1x16x128xf32, #tpu.memory_space<vmem>>, %arg7: memref<16x384xbf16, #tpu.memory_space<vmem>>, %arg8: memref<4x16x32xbf16, #tpu.memory_space<vmem>>, %arg9: memref<4x16x32xbf16, #tpu.memory_space<vmem>>, %arg10: memref<4x16x32xbf16, #tpu.memory_space<vmem>>, %arg11: memref<16x128xbf16, #tpu.memory_space<vmem>>) attributes {dimension_semantics = [#tpu.dimension_semantics<parallel>], iteration_bounds = array<i64: 2>, scalar_prefetch = 0 : i64, scratch_operands = 5 : i64, tpu.core_type = #tpu.core_type<tc>, window_params = [{transform_indices = @transform_0, window_bounds = array<i64: 1, 16, 128>}, {pipeline_mode = #tpu.pipeline_mode<synchronous>, transform_indices = @transform_1, window_bounds = array<i64: 128, 384>}, {pipeline_mode = #tpu.pipeline_mode<synchronous>, transform_indices = @transform_2, window_bounds = array<i64: 1, 384>}, {pipeline_mode = #tpu.pipeline_mode<synchronous>, transform_indices = @transform_3, window_bounds = array<i64: 128, 128>}, {pipeline_mode = #tpu.pipeline_mode<synchronous>, transform_indices = @transform_4, window_bounds = array<i64: 1, 128>}, {transform_indices = @transform_5, window_bounds = array<i64: 1, 16, 128>}]} {
    %c0 = arith.constant 0 : index
    %c0_0 = arith.constant 0 : index
    %c0_1 = arith.constant 0 : index
    %0 = vector.load %arg1[%c0, %c0_0, %c0_1] : memref<1x16x128xbf16, #tpu.memory_space<vmem>>, vector<1x16x128xbf16>
    %1 = vector.shape_cast %0 : vector<1x16x128xbf16> to vector<16x128xbf16>
    %c0_2 = arith.constant 0 : index
    %c0_3 = arith.constant 0 : index
    %2 = vector.load %arg2[%c0_2, %c0_3] : memref<128x384xbf16, #tpu.memory_space<vmem>>, vector<128x384xbf16>
    %cst = arith.constant dense<0.000000e+00> : vector<16x384xf32>
    %3 = tpu.matmul %1, %2, %cst {dimension_numbers = #tpu.dot_dimension_numbers<[1], [0], [0], [1], [0, 0, 1, 1], [], []>} : vector<16x128xbf16>, vector<128x384xbf16>, vector<16x384xf32> -> vector<16x384xf32>
    %c0_4 = arith.constant 0 : index
    %c0_5 = arith.constant 0 : index
    %4 = vector.load %arg3[%c0_4, %c0_5] : memref<1x384xf32, #tpu.memory_space<vmem>>, vector<1x384xf32>
    %5 = vector.broadcast %4 : vector<1x384xf32> to vector<16x384xf32>
    %6 = arith.addf %3, %5 : vector<16x384xf32>
    %7 = arith.truncf %6 : vector<16x384xf32> to vector<16x384xbf16>
    %c0_6 = arith.constant 0 : index
    %c0_7 = arith.constant 0 : index
    %8 = vector.load %arg7[%c0_6, %c0_7] : memref<16x384xbf16, #tpu.memory_space<vmem>>, vector<16x384xbf16>
    tpu.vector_store %arg7[%c0_6, %c0_7], %7 {strides = array<i32>} : memref<16x384xbf16, #tpu.memory_space<vmem>>, vector<16x384xbf16>,
    %c0_8 = arith.constant 0 : index
    %c0_9 = arith.constant 0 : index
    %9 = vector.load %arg7[%c0_8, %c0_9] : memref<16x384xbf16, #tpu.memory_space<vmem>>, vector<16x32xbf16>
    %c0_10 = arith.constant 0 : index
    %c0_11 = arith.constant 0 : index
    %c0_12 = arith.constant 0 : index
    %10 = vector.load %arg8[%c0_10, %c0_11, %c0_12] : memref<4x16x32xbf16, #tpu.memory_space<vmem>>, vector<1x16x32xbf16>
    %11 = vector.shape_cast %10 : vector<1x16x32xbf16> to vector<16x32xbf16>
    %12 = vector.shape_cast %9 : vector<16x32xbf16> to vector<1x16x32xbf16>
    tpu.vector_store %arg8[%c0_10, %c0_11, %c0_12], %12 {strides = array<i32>} : memref<4x16x32xbf16, #tpu.memory_space<vmem>>, vector<1x16x32xbf16>,
    %c0_13 = arith.constant 0 : index
    %c128 = arith.constant 128 : index
    %13 = vector.load %arg7[%c0_13, %c128] : memref<16x384xbf16, #tpu.memory_space<vmem>>, vector<16x32xbf16>
    %c0_14 = arith.constant 0 : index
    %c0_15 = arith.constant 0 : index
    %c0_16 = arith.constant 0 : index
    %14 = vector.load %arg9[%c0_14, %c0_15, %c0_16] : memref<4x16x32xbf16, #tpu.memory_space<vmem>>, vector<1x16x32xbf16>
    %15 = vector.shape_cast %14 : vector<1x16x32xbf16> to vector<16x32xbf16>
    %16 = vector.shape_cast %13 : vector<16x32xbf16> to vector<1x16x32xbf16>
    tpu.vector_store %arg9[%c0_14, %c0_15, %c0_16], %16 {strides = array<i32>} : memref<4x16x32xbf16, #tpu.memory_space<vmem>>, vector<1x16x32xbf16>,
    %c0_17 = arith.constant 0 : index
    %c256 = arith.constant 256 : index
    %17 = vector.load %arg7[%c0_17, %c256] : memref<16x384xbf16, #tpu.memory_space<vmem>>, vector<16x32xbf16>
    %c0_18 = arith.constant 0 : index
    %c0_19 = arith.constant 0 : index
    %c0_20 = arith.constant 0 : index
    %18 = vector.load %arg10[%c0_18, %c0_19, %c0_20] : memref<4x16x32xbf16, #tpu.memory_space<vmem>>, vector<1x16x32xbf16>
    %19 = vector.shape_cast %18 : vector<1x16x32xbf16> to vector<16x32xbf16>
    %20 = vector.shape_cast %17 : vector<16x32xbf16> to vector<1x16x32xbf16>
    tpu.vector_store %arg10[%c0_18, %c0_19, %c0_20], %20 {strides = array<i32>} : memref<4x16x32xbf16, #tpu.memory_space<vmem>>, vector<1x16x32xbf16>,
    %c0_21 = arith.constant 0 : index
    %c32 = arith.constant 32 : index
    %21 = vector.load %arg7[%c0_21, %c32] : memref<16x384xbf16, #tpu.memory_space<vmem>>, vector<16x32xbf16>
    %c1 = arith.constant 1 : index
    %c0_22 = arith.constant 0 : index
    %c0_23 = arith.constant 0 : index
    %22 = vector.load %arg8[%c1, %c0_22, %c0_23] : memref<4x16x32xbf16, #tpu.memory_space<vmem>>, vector<1x16x32xbf16>
    %23 = vector.shape_cast %22 : vector<1x16x32xbf16> to vector<16x32xbf16>
    %24 = vector.shape_cast %21 : vector<16x32xbf16> to vector<1x16x32xbf16>
    tpu.vector_store %arg8[%c1, %c0_22, %c0_23], %24 {strides = array<i32>} : memref<4x16x32xbf16, #tpu.memory_space<vmem>>, vector<1x16x32xbf16>,
    %c0_24 = arith.constant 0 : index
    %c160 = arith.constant 160 : index
    %25 = vector.load %arg7[%c0_24, %c160] : memref<16x384xbf16, #tpu.memory_space<vmem>>, vector<16x32xbf16>
    %c1_25 = arith.constant 1 : index
    %c0_26 = arith.constant 0 : index
    %c0_27 = arith.constant 0 : index
    %26 = vector.load %arg9[%c1_25, %c0_26, %c0_27] : memref<4x16x32xbf16, #tpu.memory_space<vmem>>, vector<1x16x32xbf16>
    %27 = vector.shape_cast %26 : vector<1x16x32xbf16> to vector<16x32xbf16>
    %28 = vector.shape_cast %25 : vector<16x32xbf16> to vector<1x16x32xbf16>
    tpu.vector_store %arg9[%c1_25, %c0_26, %c0_27], %28 {strides = array<i32>} : memref<4x16x32xbf16, #tpu.memory_space<vmem>>, vector<1x16x32xbf16>,
    %c0_28 = arith.constant 0 : index
    %c288 = arith.constant 288 : index
    %29 = vector.load %arg7[%c0_28, %c288] : memref<16x384xbf16, #tpu.memory_space<vmem>>, vector<16x32xbf16>
    %c1_29 = arith.constant 1 : index
    %c0_30 = arith.constant 0 : index
    %c0_31 = arith.constant 0 : index
    %30 = vector.load %arg10[%c1_29, %c0_30, %c0_31] : memref<4x16x32xbf16, #tpu.memory_space<vmem>>, vector<1x16x32xbf16>
    %31 = vector.shape_cast %30 : vector<1x16x32xbf16> to vector<16x32xbf16>
    %32 = vector.shape_cast %29 : vector<16x32xbf16> to vector<1x16x32xbf16>
    tpu.vector_store %arg10[%c1_29, %c0_30, %c0_31], %32 {strides = array<i32>} : memref<4x16x32xbf16, #tpu.memory_space<vmem>>, vector<1x16x32xbf16>,
    %c0_32 = arith.constant 0 : index
    %c64 = arith.constant 64 : index
    %33 = vector.load %arg7[%c0_32, %c64] : memref<16x384xbf16, #tpu.memory_space<vmem>>, vector<16x32xbf16>
    %c2 = arith.constant 2 : index
    %c0_33 = arith.constant 0 : index
    %c0_34 = arith.constant 0 : index
    %34 = vector.load %arg8[%c2, %c0_33, %c0_34] : memref<4x16x32xbf16, #tpu.memory_space<vmem>>, vector<1x16x32xbf16>
    %35 = vector.shape_cast %34 : vector<1x16x32xbf16> to vector<16x32xbf16>
    %36 = vector.shape_cast %33 : vector<16x32xbf16> to vector<1x16x32xbf16>
    tpu.vector_store %arg8[%c2, %c0_33, %c0_34], %36 {strides = array<i32>} : memref<4x16x32xbf16, #tpu.memory_space<vmem>>, vector<1x16x32xbf16>,
    %c0_35 = arith.constant 0 : index
    %c192 = arith.constant 192 : index
    %37 = vector.load %arg7[%c0_35, %c192] : memref<16x384xbf16, #tpu.memory_space<vmem>>, vector<16x32xbf16>
    %c2_36 = arith.constant 2 : index
    %c0_37 = arith.constant 0 : index
    %c0_38 = arith.constant 0 : index
    %38 = vector.load %arg9[%c2_36, %c0_37, %c0_38] : memref<4x16x32xbf16, #tpu.memory_space<vmem>>, vector<1x16x32xbf16>
    %39 = vector.shape_cast %38 : vector<1x16x32xbf16> to vector<16x32xbf16>
    %40 = vector.shape_cast %37 : vector<16x32xbf16> to vector<1x16x32xbf16>
    tpu.vector_store %arg9[%c2_36, %c0_37, %c0_38], %40 {strides = array<i32>} : memref<4x16x32xbf16, #tpu.memory_space<vmem>>, vector<1x16x32xbf16>,
    %c0_39 = arith.constant 0 : index
    %c320 = arith.constant 320 : index
    %41 = vector.load %arg7[%c0_39, %c320] : memref<16x384xbf16, #tpu.memory_space<vmem>>, vector<16x32xbf16>
    %c2_40 = arith.constant 2 : index
    %c0_41 = arith.constant 0 : index
    %c0_42 = arith.constant 0 : index
    %42 = vector.load %arg10[%c2_40, %c0_41, %c0_42] : memref<4x16x32xbf16, #tpu.memory_space<vmem>>, vector<1x16x32xbf16>
    %43 = vector.shape_cast %42 : vector<1x16x32xbf16> to vector<16x32xbf16>
    %44 = vector.shape_cast %41 : vector<16x32xbf16> to vector<1x16x32xbf16>
    tpu.vector_store %arg10[%c2_40, %c0_41, %c0_42], %44 {strides = array<i32>} : memref<4x16x32xbf16, #tpu.memory_space<vmem>>, vector<1x16x32xbf16>,
    %c0_43 = arith.constant 0 : index
    %c96 = arith.constant 96 : index
    %45 = vector.load %arg7[%c0_43, %c96] : memref<16x384xbf16, #tpu.memory_space<vmem>>, vector<16x32xbf16>
    %c3 = arith.constant 3 : index
    %c0_44 = arith.constant 0 : index
    %c0_45 = arith.constant 0 : index
    %46 = vector.load %arg8[%c3, %c0_44, %c0_45] : memref<4x16x32xbf16, #tpu.memory_space<vmem>>, vector<1x16x32xbf16>
    %47 = vector.shape_cast %46 : vector<1x16x32xbf16> to vector<16x32xbf16>
    %48 = vector.shape_cast %45 : vector<16x32xbf16> to vector<1x16x32xbf16>
    tpu.vector_store %arg8[%c3, %c0_44, %c0_45], %48 {strides = array<i32>} : memref<4x16x32xbf16, #tpu.memory_space<vmem>>, vector<1x16x32xbf16>,
    %c0_46 = arith.constant 0 : index
    %c224 = arith.constant 224 : index
    %49 = vector.load %arg7[%c0_46, %c224] : memref<16x384xbf16, #tpu.memory_space<vmem>>, vector<16x32xbf16>
    %c3_47 = arith.constant 3 : index
    %c0_48 = arith.constant 0 : index
    %c0_49 = arith.constant 0 : index
    %50 = vector.load %arg9[%c3_47, %c0_48, %c0_49] : memref<4x16x32xbf16, #tpu.memory_space<vmem>>, vector<1x16x32xbf16>
    %51 = vector.shape_cast %50 : vector<1x16x32xbf16> to vector<16x32xbf16>
    %52 = vector.shape_cast %49 : vector<16x32xbf16> to vector<1x16x32xbf16>
    tpu.vector_store %arg9[%c3_47, %c0_48, %c0_49], %52 {strides = array<i32>} : memref<4x16x32xbf16, #tpu.memory_space<vmem>>, vector<1x16x32xbf16>,
    %c0_50 = arith.constant 0 : index
    %c352 = arith.constant 352 : index
    %53 = vector.load %arg7[%c0_50, %c352] : memref<16x384xbf16, #tpu.memory_space<vmem>>, vector<16x32xbf16>
    %c3_51 = arith.constant 3 : index
    %c0_52 = arith.constant 0 : index
    %c0_53 = arith.constant 0 : index
    %54 = vector.load %arg10[%c3_51, %c0_52, %c0_53] : memref<4x16x32xbf16, #tpu.memory_space<vmem>>, vector<1x16x32xbf16>
    %55 = vector.shape_cast %54 : vector<1x16x32xbf16> to vector<16x32xbf16>
    %56 = vector.shape_cast %53 : vector<16x32xbf16> to vector<1x16x32xbf16>
    tpu.vector_store %arg10[%c3_51, %c0_52, %c0_53], %56 {strides = array<i32>} : memref<4x16x32xbf16, #tpu.memory_space<vmem>>, vector<1x16x32xbf16>,
    %c0_54 = arith.constant 0 : index
    %c0_55 = arith.constant 0 : index
    %c0_56 = arith.constant 0 : index
    %57 = vector.load %arg8[%c0_54, %c0_55, %c0_56] : memref<4x16x32xbf16, #tpu.memory_space<vmem>>, vector<4x16x32xbf16>
    %c0_57 = arith.constant 0 : index
    %c0_58 = arith.constant 0 : index
    %c0_59 = arith.constant 0 : index
    %58 = vector.load %arg9[%c0_57, %c0_58, %c0_59] : memref<4x16x32xbf16, #tpu.memory_space<vmem>>, vector<4x16x32xbf16>
    %c0_60 = arith.constant 0 : index
    %c0_61 = arith.constant 0 : index
    %c0_62 = arith.constant 0 : index
    %59 = vector.load %arg10[%c0_60, %c0_61, %c0_62] : memref<4x16x32xbf16, #tpu.memory_space<vmem>>, vector<4x16x32xbf16>
    "tpu.trace_start"() <{level = 10 : i32, message = "hqd,hkd->hqk"}> : () -> ()
    %cst_63 = arith.constant dense<0.000000e+00> : vector<4x16x16xf32>
    %60 = tpu.matmul %57, %58, %cst_63 {dimension_numbers = #tpu.dot_dimension_numbers<[2], [2], [1], [1], [0, 0, 0, 1, 1, 1], [0], [0]>} : vector<4x16x32xbf16>, vector<4x16x32xbf16>, vector<4x16x16xf32> -> vector<4x16x16xf32>
    "tpu.trace_stop"() : () -> ()
    %cst_64 = arith.constant dense<0xFF800000> : vector<4x16xf32>
    %61 = vector.multi_reduction <maximumf>, %60, %cst_64 [2] : vector<4x16x16xf32> to vector<4x16xf32>
    %62 = vector.shape_cast %61 : vector<4x16xf32> to vector<4x16x1xf32>
    %63 = vector.broadcast %62 : vector<4x16x1xf32> to vector<4x16x16xf32>
    %64 = arith.subf %60, %63 : vector<4x16x16xf32>
    %65 = math.exp %64 : vector<4x16x16xf32>
    %cst_65 = arith.constant dense<0.000000e+00> : vector<4x16xf32>
    %66 = vector.multi_reduction <add>, %65, %cst_65 [2] : vector<4x16x16xf32> to vector<4x16xf32>
    %67 = vector.shape_cast %66 : vector<4x16xf32> to vector<4x16x1xf32>
    %68 = tpu.reciprocal %67 {approx = true} : vector<4x16x1xf32> -> vector<4x16x1xf32>
    %69 = vector.broadcast %68 : vector<4x16x1xf32> to vector<4x16x16xf32>
    %70 = arith.mulf %65, %69 : vector<4x16x16xf32>
    %71 = arith.truncf %70 : vector<4x16x16xf32> to vector<4x16x16xbf16>
    "tpu.trace_start"() <{level = 10 : i32, message = "hqk,hkd->hqd"}> : () -> ()
    %cst_66 = arith.constant dense<0.000000e+00> : vector<4x16x32xf32>
    %72 = tpu.matmul %71, %59, %cst_66 {dimension_numbers = #tpu.dot_dimension_numbers<[2], [1], [1], [2], [0, 0, 0, 1, 1, 2], [0], [0]>} : vector<4x16x16xbf16>, vector<4x16x32xbf16>, vector<4x16x32xf32> -> vector<4x16x32xf32>
    "tpu.trace_stop"() : () -> ()
    %73 = vector.extract_strided_slice %72 {offsets = [0, 0, 0], sizes = [1, 16, 32], strides = [1, 1, 1]} : vector<4x16x32xf32> to vector<1x16x32xf32>
    %74 = vector.shape_cast %73 : vector<1x16x32xf32> to vector<16x32xf32>
    %75 = arith.truncf %74 : vector<16x32xf32> to vector<16x32xbf16>
    %c0_67 = arith.constant 0 : index
    %c0_68 = arith.constant 0 : index
    %76 = vector.load %arg11[%c0_67, %c0_68] : memref<16x128xbf16, #tpu.memory_space<vmem>>, vector<16x32xbf16>
    tpu.vector_store %arg11[%c0_67, %c0_68], %75 {strides = array<i32>} : memref<16x128xbf16, #tpu.memory_space<vmem>>, vector<16x32xbf16>,
    %77 = vector.extract_strided_slice %72 {offsets = [1, 0, 0], sizes = [1, 16, 32], strides = [1, 1, 1]} : vector<4x16x32xf32> to vector<1x16x32xf32>
    %78 = vector.shape_cast %77 : vector<1x16x32xf32> to vector<16x32xf32>
    %79 = arith.truncf %78 : vector<16x32xf32> to vector<16x32xbf16>
    %c0_69 = arith.constant 0 : index
    %c32_70 = arith.constant 32 : index
    %80 = vector.load %arg11[%c0_69, %c32_70] : memref<16x128xbf16, #tpu.memory_space<vmem>>, vector<16x32xbf16>
    tpu.vector_store %arg11[%c0_69, %c32_70], %79 {strides = array<i32>} : memref<16x128xbf16, #tpu.memory_space<vmem>>, vector<16x32xbf16>,
    %81 = vector.extract_strided_slice %72 {offsets = [2, 0, 0], sizes = [1, 16, 32], strides = [1, 1, 1]} : vector<4x16x32xf32> to vector<1x16x32xf32>
    %82 = vector.shape_cast %81 : vector<1x16x32xf32> to vector<16x32xf32>
    %83 = arith.truncf %82 : vector<16x32xf32> to vector<16x32xbf16>
    %c0_71 = arith.constant 0 : index
    %c64_72 = arith.constant 64 : index
    %84 = vector.load %arg11[%c0_71, %c64_72] : memref<16x128xbf16, #tpu.memory_space<vmem>>, vector<16x32xbf16>
    tpu.vector_store %arg11[%c0_71, %c64_72], %83 {strides = array<i32>} : memref<16x128xbf16, #tpu.memory_space<vmem>>, vector<16x32xbf16>,
    %85 = vector.extract_strided_slice %72 {offsets = [3, 0, 0], sizes = [1, 16, 32], strides = [1, 1, 1]} : vector<4x16x32xf32> to vector<1x16x32xf32>
    %86 = vector.shape_cast %85 : vector<1x16x32xf32> to vector<16x32xf32>
    %87 = arith.truncf %86 : vector<16x32xf32> to vector<16x32xbf16>
    %c0_73 = arith.constant 0 : index
    %c96_74 = arith.constant 96 : index
    %88 = vector.load %arg11[%c0_73, %c96_74] : memref<16x128xbf16, #tpu.memory_space<vmem>>, vector<16x32xbf16>
    tpu.vector_store %arg11[%c0_73, %c96_74], %87 {strides = array<i32>} : memref<16x128xbf16, #tpu.memory_space<vmem>>, vector<16x32xbf16>,
    %c0_75 = arith.constant 0 : index
    %c0_76 = arith.constant 0 : index
    %89 = vector.load %arg11[%c0_75, %c0_76] : memref<16x128xbf16, #tpu.memory_space<vmem>>, vector<16x128xbf16>
    %c0_77 = arith.constant 0 : index
    %c0_78 = arith.constant 0 : index
    %90 = vector.load %arg4[%c0_77, %c0_78] : memref<128x128xbf16, #tpu.memory_space<vmem>>, vector<128x128xbf16>
    %cst_79 = arith.constant dense<0.000000e+00> : vector<16x128xf32>
    %91 = tpu.matmul %89, %90, %cst_79 {dimension_numbers = #tpu.dot_dimension_numbers<[1], [0], [0], [1], [0, 0, 1, 1], [], []>} : vector<16x128xbf16>, vector<128x128xbf16>, vector<16x128xf32> -> vector<16x128xf32>
    %c0_80 = arith.constant 0 : index
    %c0_81 = arith.constant 0 : index
    %92 = vector.load %arg5[%c0_80, %c0_81] : memref<1x128xf32, #tpu.memory_space<vmem>>, vector<1x128xf32>
    %93 = vector.broadcast %92 : vector<1x128xf32> to vector<16x128xf32>
    %94 = arith.addf %91, %93 : vector<16x128xf32>
    %c0_82 = arith.constant 0 : index
    %c0_83 = arith.constant 0 : index
    %c0_84 = arith.constant 0 : index
    %95 = vector.load %arg6[%c0_82, %c0_83, %c0_84] : memref<1x16x128xf32, #tpu.memory_space<vmem>>, vector<1x16x128xf32>
    %96 = vector.shape_cast %95 : vector<1x16x128xf32> to vector<16x128xf32>
    %97 = vector.shape_cast %94 : vector<16x128xf32> to vector<1x16x128xf32>
    tpu.vector_store %arg6[%c0_82, %c0_83, %c0_84], %97 {strides = array<i32>} : memref<1x16x128xf32, #tpu.memory_space<vmem>>, vector<1x16x128xf32>,
    return
  }
  func.func @transform_0(%arg0: i32) -> (i32, i32, i32) {
    %c0_i32 = arith.constant 0 : i32
    %c0_i32_0 = arith.constant 0 : i32
    %c0_i32_1 = arith.constant 0 : i32
    return %arg0, %c0_i32, %c0_i32_0 : i32, i32, i32
  }
  func.func @transform_1(%arg0: i32) -> (i32, i32) {
    %c0_i32 = arith.constant 0 : i32
    %c0_i32_0 = arith.constant 0 : i32
    %c0_i32_1 = arith.constant 0 : i32
    return %c0_i32, %c0_i32_0 : i32, i32
  }
  func.func @transform_2(%arg0: i32) -> (i32, i32) {
    %c0_i32 = arith.constant 0 : i32
    %c0_i32_0 = arith.constant 0 : i32
    %c0_i32_1 = arith.constant 0 : i32
    return %c0_i32, %c0_i32_0 : i32, i32
  }
  func.func @transform_3(%arg0: i32) -> (i32, i32) {
    %c0_i32 = arith.constant 0 : i32
    %c0_i32_0 = arith.constant 0 : i32
    %c0_i32_1 = arith.constant 0 : i32
    return %c0_i32, %c0_i32_0 : i32, i32
  }
  func.func @transform_4(%arg0: i32) -> (i32, i32) {
    %c0_i32 = arith.constant 0 : i32
    %c0_i32_0 = arith.constant 0 : i32
    %c0_i32_1 = arith.constant 0 : i32
    return %c0_i32, %c0_i32_0 : i32, i32
  }
  func.func @transform_5(%arg0: i32) -> (i32, i32, i32) {
    %c0_i32 = arith.constant 0 : i32
    %c0_i32_0 = arith.constant 0 : i32
    %c0_i32_1 = arith.constant 0 : i32
    return %arg0, %c0_i32, %c0_i32_0 : i32, i32, i32
  }
}

</mosaic_0001>

<llo_original>
// kernel: tpu_custom_call.1
$region0: #{tpu_custom_call.1}
  #allocation0 [shape = 'u32[]', space=smem, size = 0x4, offset = 0x4, fixed_abs, tag = 'smem constant byte address 0x4 - core index']
  #allocation1 [shape = 'u32[144,128]{1,0:T(1,128)}', space=vmem, size = 0x12000, scoped, tag = 'internal scratch']
  #allocation2 [shape = 'bf16[16,384]{1,0:T(8,128)(2,1)}', space=vmem, size = 0x3000, scoped, tag = 'scratch operand']
  #allocation3 [shape = 'bf16[4,16,32]{2,1,0:T(8,128)(2,1)}', space=vmem, size = 0x4000, scoped, tag = 'scratch operand']
  #allocation4 [shape = 'bf16[4,16,32]{2,1,0:T(8,128)(2,1)}', space=vmem, size = 0x4000, scoped, tag = 'scratch operand']
  #allocation5 [shape = 'bf16[4,16,32]{2,1,0:T(8,128)(2,1)}', space=vmem, size = 0x4000, scoped, tag = 'scratch operand']
  #allocation6 [shape = 'bf16[16,128]{1,0:T(8,128)(2,1)}', space=vmem, size = 0x1000, scoped, tag = 'scratch operand']
  %s0 = inlined_call_operand.hbm [shape: bf16[2,16,128], index: 0, kind: input, shape index: {}]
  %s1 = inlined_call_operand.hbm [shape: bf16[128,384], index: 1, kind: input, shape index: {}]
  %s2 = inlined_call_operand.vmem [shape: f32[1,384], index: 2, kind: input, shape index: {}]
  %s3 = inlined_call_operand.hbm [shape: bf16[128,128], index: 3, kind: input, shape index: {}]
  %s4 = inlined_call_operand.vmem [shape: f32[1,128], index: 4, kind: input, shape index: {}]
  %s5 = inlined_call_operand.hbm [shape: f32[2,16,128], index: 5, kind: output, shape index: {}]
  %s6 = sld [smem:[#allocation0]]
  $region65: #{tpu_custom_call.1} parent=0
    _
  %s8 = ssub.s32 1, %s6
  %s9 = scalar_select 0, %s8, %s6
  $region1: #{tpu_custom_call.1} parent=0
    #allocation7 [shape = 'u8[8192]{0}', space=vmem, size = 0x2000, scoped, tag = 'input window, operand 0']
    #allocation8 [shape = 's32[2]{0}', space=sflag, size = 0x8, scoped, tag = 'scoped memory for tpu_custom_call.1']
    #allocation9 [shape = 's32[2]{0}', space=sflag, size = 0x8, scoped, tag = 'scoped memory for tpu_custom_call.1']
    #allocation10 [shape = 'u8[98304]{0}', space=vmem, size = 0x18000, scoped, tag = 'input window, operand 1, single buffered']
    #allocation11 [shape = 's32[1]{0}', space=sflag, size = 0x4, scoped, tag = 'scoped memory for tpu_custom_call.1']
    #allocation12 [shape = 'u8[32768]{0}', space=vmem, size = 0x8000, scoped, tag = 'input window, operand 3, single buffered']
    #allocation13 [shape = 'u8[16384]{0}', space=vmem, size = 0x4000, scoped, tag = 'output window, operand 0']
    %10 = vsyncpa [#allocation8], 0
    %s11 = scalar_lea.sflag [#allocation8], 1
    %12 = vsyncpa %s11, 0
    %13 = vsyncpa [#allocation11], 0
    %14 = vsyncpa [#allocation9], 0
    %s15 = scalar_lea.sflag [#allocation9], 1
    %16 = vsyncpa %s15, 0
    loop: start=0, step=1, limit=4
    $region2: #{tpu_custom_call.1} parent=1 // loop_pre_header
      _
    $region3: #{tpu_custom_call.1} parent=1 // loop_header
      %s18 = sphi 0, %s22
      %p19 = scmp.ge.s32.totalorder %s18, 4
      %s28 = sphi 0, %s30
      %s31 = sphi 0, %s28
      %s32 = sphi 0, %s31
      %s48 = sphi 0, %s32
      %s52 = sphi 0, %s52
      %s54 = sphi 0, %s52
      %s55 = sphi 0, %s54
      %s69 = sphi 0, %s55
      %s73 = sphi 0, %s73
      %s75 = sphi 0, %s73
      %s76 = sphi 0, %s75
      %s90 = sphi 0, %s76
      %s94 = sphi 0, %s94
      %s96 = sphi 0, %s94
      %s97 = sphi 0, %s96
      %s111 = sphi 0, %s97
      %s115 = sphi 0, %s115
      %s117 = sphi 0, %s115
      %s118 = sphi 0, %s117
      %s132 = sphi 0, %s118
      %s138 = sphi 0, %s140
      %s141 = sphi 0, %s138
      %s142 = sphi 0, %s141
      %s158 = sphi 0, %s142
    $region4: #{tpu_custom_call.1} parent=1 // loop_header_branch
      %21 = sbr.rel (%p19) target = $region8
    $region5: #{tpu_custom_call.1} parent=1 // loop_body
      %s23 = ssub.s32 %s18, 1
      %s24 = ssub.s32 %s18, 2
      %s25 = sadd.s32 %s18, 1
      %s26 = ssub.s32 %s18, %s25
      %p27 = scmp.eq.s32.totalorder %s26, 0
      %s29 = sadd.s32 %s28, 1
      %s30 = scalar_select %p27, %s28, %s29
      %p33 = pneg %p27
      %p34 = scmp.eq.s32.totalorder %s18, 1
      %p35 = por %p33, %p34
      %p36 = scmp.ne.s32.totalorder %s28, %s31
      %p37 = scmp.eq.s32.totalorder %s18, 0
      %p38 = por %p36, %p37
      %p39 = scmp.ne.s32.totalorder %s28, %s31
      %p40 = scmp.eq.s32.totalorder %s23, 1
      %p41 = por %p39, %p40
      %p42 = scmp.ne.s32.totalorder %s31, %s32
      %p43 = scmp.eq.s32.totalorder %s23, 0
      %p44 = por %p42, %p43
      %p45 = scmp.ne.s32.totalorder %s31, %s32
      %p46 = scmp.eq.s32.totalorder %s24, 1
      %p47 = por %p45, %p46
      %p49 = scmp.ne.s32.totalorder %s32, %s48
      %p50 = scmp.eq.s32.totalorder %s24, 0
      %p51 = por %p49, %p50
      %s53 = sadd.s32 %s52, 1
      %p56 = scmp.eq.s32.totalorder %s18, 1
      %p57 = scmp.ne.s32.totalorder %s52, %s54
      %p58 = scmp.eq.s32.totalorder %s18, 0
      %p59 = por %p57, %p58
      %p60 = scmp.ne.s32.totalorder %s52, %s54
      %p61 = scmp.eq.s32.totalorder %s23, 1
      %p62 = por %p60, %p61
      %p63 = scmp.ne.s32.totalorder %s54, %s55
      %p64 = scmp.eq.s32.totalorder %s23, 0
      %p65 = por %p63, %p64
      %p66 = scmp.ne.s32.totalorder %s54, %s55
      %p67 = scmp.eq.s32.totalorder %s24, 1
      %p68 = por %p66, %p67
      %p70 = scmp.ne.s32.totalorder %s55, %s69
      %p71 = scmp.eq.s32.totalorder %s24, 0
      %p72 = por %p70, %p71
      %s74 = sadd.s32 %s73, 1
      %p77 = scmp.eq.s32.totalorder %s18, 1
      %p78 = scmp.ne.s32.totalorder %s73, %s75
      %p79 = scmp.eq.s32.totalorder %s18, 0
      %p80 = por %p78, %p79
      %p81 = scmp.ne.s32.totalorder %s73, %s75
      %p82 = scmp.eq.s32.totalorder %s23, 1
      %p83 = por %p81, %p82
      %p84 = scmp.ne.s32.totalorder %s75, %s76
      %p85 = scmp.eq.s32.totalorder %s23, 0
      %p86 = por %p84, %p85
      %p87 = scmp.ne.s32.totalorder %s75, %s76
      %p88 = scmp.eq.s32.totalorder %s24, 1
      %p89 = por %p87, %p88
      %p91 = scmp.ne.s32.totalorder %s76, %s90
      %p92 = scmp.eq.s32.totalorder %s24, 0
      %p93 = por %p91, %p92
      %s95 = sadd.s32 %s94, 1
      %p98 = scmp.eq.s32.totalorder %s18, 1
      %p99 = scmp.ne.s32.totalorder %s94, %s96
      %p100 = scmp.eq.s32.totalorder %s18, 0
      %p101 = por %p99, %p100
      %p102 = scmp.ne.s32.totalorder %s94, %s96
      %p103 = scmp.eq.s32.totalorder %s23, 1
      %p104 = por %p102, %p103
      %p105 = scmp.ne.s32.totalorder %s96, %s97
      %p106 = scmp.eq.s32.totalorder %s23, 0
      %p107 = por %p105, %p106
      %p108 = scmp.ne.s32.totalorder %s96, %s97
      %p109 = scmp.eq.s32.totalorder %s24, 1
      %p110 = por %p108, %p109
      %p112 = scmp.ne.s32.totalorder %s97, %s111
      %p113 = scmp.eq.s32.totalorder %s24, 0
      %p114 = por %p112, %p113
      %s116 = sadd.s32 %s115, 1
      %p119 = scmp.eq.s32.totalorder %s18, 1
      %p120 = scmp.ne.s32.totalorder %s115, %s117
      %p121 = scmp.eq.s32.totalorder %s18, 0
      %p122 = por %p120, %p121
      %p123 = scmp.ne.s32.totalorder %s115, %s117
      %p124 = scmp.eq.s32.totalorder %s23, 1
      %p125 = por %p123, %p124
      %p126 = scmp.ne.s32.totalorder %s117, %s118
      %p127 = scmp.eq.s32.totalorder %s23, 0
      %p128 = por %p126, %p127
      %p129 = scmp.ne.s32.totalorder %s117, %s118
      %p130 = scmp.eq.s32.totalorder %s24, 1
      %p131 = por %p129, %p130
      %p133 = scmp.ne.s32.totalorder %s118, %s132
      %p134 = scmp.eq.s32.totalorder %s24, 0
      %p135 = por %p133, %p134
      %s136 = ssub.s32 %s18, %s25
      %p137 = scmp.eq.s32.totalorder %s136, 0
      %s139 = sadd.s32 %s138, 1
      %s140 = scalar_select %p137, %s138, %s139
      %p143 = pneg %p137
      %p144 = scmp.eq.s32.totalorder %s18, 1
      %p145 = por %p143, %p144
      %p146 = scmp.ne.s32.totalorder %s138, %s141
      %p147 = scmp.eq.s32.totalorder %s18, 0
      %p148 = por %p146, %p147
      %p149 = scmp.ne.s32.totalorder %s138, %s141
      %p150 = scmp.eq.s32.totalorder %s23, 1
      %p151 = por %p149, %p150
      %p152 = scmp.ne.s32.totalorder %s141, %s142
      %p153 = scmp.eq.s32.totalorder %s23, 0
      %p154 = por %p152, %p153
      %p155 = scmp.ne.s32.totalorder %s141, %s142
      %p156 = scmp.eq.s32.totalorder %s24, 1
      %p157 = por %p155, %p156
      %p159 = scmp.ne.s32.totalorder %s142, %s158
      %p160 = scmp.eq.s32.totalorder %s24, 0
      %p161 = por %p159, %p160
      %p162 = scmp.le.s32.totalorder 1, %s18
      %p163 = scmp.lt.s32.totalorder %s18, 3
      %p164 = pnand %p162, %p163
      %p165 = pneg %p164
      // Predicated region
      $region9: #{tpu_custom_call.1} parent=5 // pred_check
        _
      $region10: #{tpu_custom_call.1} parent=5 // pred_check_branch
        %167 = sbr.rel (%p164) target = $region12
      $region11: #{tpu_custom_call.1} parent=5 // pred_region
        %s168 = ssub.s32 %s18, 1
        // Predicated region
        $region13: #{tpu_custom_call.1} parent=11 // pred_check
          %p169 = pneg %p65
        $region14: #{tpu_custom_call.1} parent=11 // pred_check_branch
          %171 = sbr.rel (%p169) target = $region16
        $region15: #{tpu_custom_call.1} parent=11 // pred_region
          %s173 = ssub.s32 3072, 3072
          %174 = vsyncadd [#allocation11], %s173
          %s175 = sshll.u32 [#allocation10], 4
          %s176 = int_to_ptr.vmem [resolvable:$true] %s175
          %181 = dma.hbm_to_vmem [thread:$0]  %s1, 3072, %s176, [#allocation11], 192, 192, 12
        $region16: #{tpu_custom_call.1} parent=11 // pred_fallthru
          _
        // Predicated region
        $region17: #{tpu_custom_call.1} parent=11 // pred_check
          %p182 = pneg %p86
        $region18: #{tpu_custom_call.1} parent=11 // pred_check_branch
          %184 = sbr.rel (%p182) target = $region20
        $region19: #{tpu_custom_call.1} parent=11 // pred_region
          _
        $region20: #{tpu_custom_call.1} parent=11 // pred_fallthru
          _
        // Predicated region
        $region21: #{tpu_custom_call.1} parent=11 // pred_check
          %p185 = pneg %p107
        $region22: #{tpu_custom_call.1} parent=11 // pred_check_branch
          %187 = sbr.rel (%p185) target = $region24
        $region23: #{tpu_custom_call.1} parent=11 // pred_region
          %s189 = ssub.s32 1024, 1024
          %190 = vsyncadd [#allocation11], %s189
          %s191 = sshll.u32 [#allocation12], 4
          %s192 = int_to_ptr.vmem [resolvable:$true] %s191
          %197 = dma.hbm_to_vmem [thread:$0]  %s3, 1024, %s192, [#allocation11], 64, 64, 4
        $region24: #{tpu_custom_call.1} parent=11 // pred_fallthru
          _
        // Predicated region
        $region25: #{tpu_custom_call.1} parent=11 // pred_check
          %p198 = pneg %p128
        $region26: #{tpu_custom_call.1} parent=11 // pred_check_branch
          %200 = sbr.rel (%p198) target = $region28
        $region27: #{tpu_custom_call.1} parent=11 // pred_region
          _
        $region28: #{tpu_custom_call.1} parent=11 // pred_fallthru
          _
      $region12: #{tpu_custom_call.1} parent=5 // pred_fallthru
        _
      %p201 = scmp.lt.s32.totalorder %s18, 2
      // Predicated region
      $region29: #{tpu_custom_call.1} parent=5 // pred_check
        %p202 = pneg %p201
      $region30: #{tpu_custom_call.1} parent=5 // pred_check_branch
        %204 = sbr.rel (%p202) target = $region32
      $region31: #{tpu_custom_call.1} parent=5 // pred_region
        // Predicated region
        $region33: #{tpu_custom_call.1} parent=31 // pred_check
          %p205 = pneg %p38
        $region34: #{tpu_custom_call.1} parent=31 // pred_check_branch
          %207 = sbr.rel (%p205) target = $region36
        $region35: #{tpu_custom_call.1} parent=31 // pred_region
          %s208 = sand.u32 %s28, 1
          %s209 = scalar_lea.sflag [#allocation8], %s208
          %s210 = sand.u32 %s28, 1
          %s211 = smul.addr %s210, 8
          %s212 = scalar_lea.vmem [#allocation7], %s211
          %s214 = ssub.s32 128, 128
          %215 = vsyncadd %s209, %s214
          %s216 = smul.addr %s18, 2
          %s217 = smul.addr %s216, 64
          %s218 = scalar_lea.hbm %s0, %s217
          %s219 = sshll.u32 %s212, 4
          %s220 = int_to_ptr.vmem [resolvable:$true] %s219
          %225 = dma.hbm_to_vmem [thread:$0]  %s218, 128, %s220, %s209, 64, 64, 4
        $region36: #{tpu_custom_call.1} parent=31 // pred_fallthru
          _
      $region32: #{tpu_custom_call.1} parent=5 // pred_fallthru
        _
      %p226 = scmp.le.s32.totalorder 1, %s18
      %p227 = scmp.lt.s32.totalorder %s18, 3
      %p228 = pnand %p226, %p227
      %p229 = pneg %p228
      // Predicated region
      $region37: #{tpu_custom_call.1} parent=5 // pred_check
        _
      $region38: #{tpu_custom_call.1} parent=5 // pred_check_branch
        %231 = sbr.rel (%p228) target = $region40
      $region39: #{tpu_custom_call.1} parent=5 // pred_region
        %s232 = ssub.s32 %s18, 1
        %s233 = sand.u32 %s31, 1
        %s234 = scalar_lea.sflag [#allocation8], %s233
        %s235 = sand.u32 %s31, 1
        %s236 = smul.addr %s235, 8
        %s237 = scalar_lea.vmem [#allocation7], %s236
        // Predicated region
        $region41: #{tpu_custom_call.1} parent=39 // pred_check
          %p238 = pneg %p44
        $region42: #{tpu_custom_call.1} parent=39 // pred_check_branch
          %240 = sbr.rel (%p238) target = $region44
        $region43: #{tpu_custom_call.1} parent=39 // pred_region
          %241 = dma.done %s234, 128
        $region44: #{tpu_custom_call.1} parent=39 // pred_fallthru
          _
        // Predicated region
        $region45: #{tpu_custom_call.1} parent=39 // pred_check
          %p242 = pneg %p65
        $region46: #{tpu_custom_call.1} parent=39 // pred_check_branch
          %244 = sbr.rel (%p242) target = $region48
        $region47: #{tpu_custom_call.1} parent=39 // pred_region
          %245 = dma.done [#allocation11], 3072
        $region48: #{tpu_custom_call.1} parent=39 // pred_fallthru
          _
        // Predicated region
        $region49: #{tpu_custom_call.1} parent=39 // pred_check
          %p246 = pneg %p107
        $region50: #{tpu_custom_call.1} parent=39 // pred_check_branch
          %248 = sbr.rel (%p246) target = $region52
        $region51: #{tpu_custom_call.1} parent=39 // pred_region
          %249 = dma.done [#allocation11], 1024
        $region52: #{tpu_custom_call.1} parent=39 // pred_fallthru
          _
        %s250 = sand.u32 %s31, 1
        %s251 = scalar_lea.sflag [#allocation8], %s250
        %s252 = sand.u32 %s31, 1
        %s253 = smul.addr %s252, 8
        %s254 = scalar_lea.vmem [#allocation7], %s253
        %p255 = pneg %p44
        %p256 = pneg %p41
        %p257 = pneg %p65
        %p258 = pneg %p62
        %p259 = pneg %p86
        %p260 = pneg %p83
        %p261 = pneg %p107
        %p262 = pneg %p104
        %p263 = pneg %p128
        %p264 = pneg %p125
        %p265 = pneg %p154
        %p266 = pneg %p151
        %s267 = sand.u32 %s141, 1
        %s268 = scalar_lea.sflag [#allocation9], %s267
        %s269 = sand.u32 %s141, 1
        %s270 = smul.addr %s269, 16
        %s271 = scalar_lea.vmem [#allocation13], %s270
        %v273 = vld [vmem:[%s237] sm:$0xf]
        %v274 = vld [vmem:[%s237 + $0x4] sm:$0xf]
        %v275 = vld [vmem:[#allocation10] sm:$0xff]
        %v276 = vld [vmem:[#allocation10 + $0x8] sm:$0xf]
        %v277 = vld [vmem:[#allocation10 + $0xc] sm:$0xff]
        %v278 = vld [vmem:[#allocation10 + $0x14] sm:$0xf]
        %v279 = vld [vmem:[#allocation10 + $0x18] sm:$0xff]
        %v280 = vld [vmem:[#allocation10 + $0x20] sm:$0xf]
        %v281 = vld [vmem:[#allocation10 + $0x24] sm:$0xff]
        %v282 = vld [vmem:[#allocation10 + $0x2c] sm:$0xf]
        %v283 = vld [vmem:[#allocation10 + $0x30] sm:$0xff]
        %v284 = vld [vmem:[#allocation10 + $0x38] sm:$0xf]
        %v285 = vld [vmem:[#allocation10 + $0x3c] sm:$0xff]
        %v286 = vld [vmem:[#allocation10 + $0x44] sm:$0xf]
        %v287 = vld [vmem:[#allocation10 + $0x48] sm:$0xff]
        %v288 = vld [vmem:[#allocation10 + $0x50] sm:$0xf]
        %v289 = vld [vmem:[#allocation10 + $0x54] sm:$0xff]
        %v290 = vld [vmem:[#allocation10 + $0x5c] sm:$0xf]
        %v291 = vld [vmem:[#allocation10 + $0x60] sm:$0xff]
        %v292 = vld [vmem:[#allocation10 + $0x68] sm:$0xf]
        %v293 = vld [vmem:[#allocation10 + $0x6c] sm:$0xff]
        %v294 = vld [vmem:[#allocation10 + $0x74] sm:$0xf]
        %v295 = vld [vmem:[#allocation10 + $0x78] sm:$0xff]
        %v296 = vld [vmem:[#allocation10 + $0x80] sm:$0xf]
        %v297 = vld [vmem:[#allocation10 + $0x84] sm:$0xff]
        %v298 = vld [vmem:[#allocation10 + $0x8c] sm:$0xf]
        %v299 = vld [vmem:[#allocation10 + $0x90] sm:$0xff]
        %v300 = vld [vmem:[#allocation10 + $0x98] sm:$0xf]
        %v301 = vld [vmem:[#allocation10 + $0x9c] sm:$0xff]
        %v302 = vld [vmem:[#allocation10 + $0xa4] sm:$0xf]
        %v303 = vld [vmem:[#allocation10 + $0xa8] sm:$0xff]
        %v304 = vld [vmem:[#allocation10 + $0xb0] sm:$0xf]
        %v305 = vld [vmem:[#allocation10 + $0xb4] sm:$0xff]
        %v306 = vld [vmem:[#allocation10 + $0xbc] sm:$0xf]
        %v307 = vld [vmem:[%s2] sm:$0x7]
        %v309 = vlaneseq
        %v310 = vshrl.u32 %v309, 7
        %v311 = vsub.s32 0, %v310
        %v312 = vrot.slane %v307, %v311
        %v313 = vlaneseq
        %v314 = vshrl.u32 %v313, 7
        %v315 = vsub.s32 1, %v314
        %v316 = vrot.slane %v307, %v315
        %v317 = vlaneseq
        %v318 = vshrl.u32 %v317, 7
        %v319 = vsub.s32 2, %v318
        %v320 = vrot.slane %v307, %v319
        %v326 = vunpack.c.l.b16 %v273
        %v327 = vunpack.c.l.b16 %v274
        %v328 = vpack.c.b16 %v327, %v326
        %v362 = vunpack.c.l.b16 %v275
        %v363 = vunpack.c.h.b16 %v275
        %v364 = vunpack.c.l.b16 %v276
        %v365 = vunpack.c.l.b16 %v277
        %v366 = vunpack.c.h.b16 %v277
        %v367 = vunpack.c.l.b16 %v278
        %v368 = vunpack.c.l.b16 %v279
        %v369 = vunpack.c.h.b16 %v279
        %v370 = vunpack.c.l.b16 %v280
        %v371 = vunpack.c.l.b16 %v281
        %v372 = vunpack.c.h.b16 %v281
        %v373 = vunpack.c.l.b16 %v282
        %v374 = vunpack.c.l.b16 %v283
        %v375 = vunpack.c.h.b16 %v283
        %v376 = vunpack.c.l.b16 %v284
        %v377 = vunpack.c.l.b16 %v285
        %v378 = vunpack.c.h.b16 %v285
        %v379 = vunpack.c.l.b16 %v286
        %v380 = vunpack.c.l.b16 %v287
        %v381 = vunpack.c.h.b16 %v287
        %v382 = vunpack.c.l.b16 %v288
        %v383 = vunpack.c.l.b16 %v289
        %v384 = vunpack.c.h.b16 %v289
        %v385 = vunpack.c.l.b16 %v290
        %v386 = vunpack.c.l.b16 %v291
        %v387 = vunpack.c.h.b16 %v291
        %v388 = vunpack.c.l.b16 %v292
        %v389 = vunpack.c.l.b16 %v293
        %v390 = vunpack.c.h.b16 %v293
        %v391 = vunpack.c.l.b16 %v294
        %v392 = vunpack.c.l.b16 %v295
        %v393 = vunpack.c.h.b16 %v295
        %v394 = vunpack.c.l.b16 %v296
        %v395 = vunpack.c.l.b16 %v297
        %v396 = vunpack.c.h.b16 %v297
        %v397 = vunpack.c.l.b16 %v298
        %v398 = vunpack.c.l.b16 %v299
        %v399 = vunpack.c.h.b16 %v299
        %v400 = vunpack.c.l.b16 %v300
        %v401 = vunpack.c.l.b16 %v301
        %v402 = vunpack.c.h.b16 %v301
        %v403 = vunpack.c.l.b16 %v302
        %v404 = vunpack.c.l.b16 %v303
        %v405 = vunpack.c.h.b16 %v303
        %v406 = vunpack.c.l.b16 %v304
        %v407 = vunpack.c.l.b16 %v305
        %v408 = vunpack.c.h.b16 %v305
        %v409 = vunpack.c.l.b16 %v306
        %v410 = vpack.c.b16 %v365, %v362
        %v411 = vpack.c.b16 %v366, %v363
        %v412 = vpack.c.b16 %v367, %v364
        %v413 = vpack.c.b16 %v371, %v368
        %v414 = vpack.c.b16 %v372, %v369
        %v415 = vpack.c.b16 %v373, %v370
        %v416 = vpack.c.b16 %v377, %v374
        %v417 = vpack.c.b16 %v378, %v375
        %v418 = vpack.c.b16 %v379, %v376
        %v419 = vpack.c.b16 %v383, %v380
        %v420 = vpack.c.b16 %v384, %v381
        %v421 = vpack.c.b16 %v385, %v382
        %v422 = vpack.c.b16 %v389, %v386
        %v423 = vpack.c.b16 %v390, %v387
        %v424 = vpack.c.b16 %v391, %v388
        %v425 = vpack.c.b16 %v395, %v392
        %v426 = vpack.c.b16 %v396, %v393
        %v427 = vpack.c.b16 %v397, %v394
        %v428 = vpack.c.b16 %v401, %v398
        %v429 = vpack.c.b16 %v402, %v399
        %v430 = vpack.c.b16 %v403, %v400
        %v431 = vpack.c.b16 %v407, %v404
        %v432 = vpack.c.b16 %v408, %v405
        %v433 = vpack.c.b16 %v409, %v406
        %458 = vmatprep.subr.bf16.mxu0 %v432
        %459 = vmatpush1.bf16.msra.mxu0 %v431
        %460 = vmatprep.subr.bf16.mxu0 %v429
        %461 = vmatpush1.bf16.msra.mxu0 %v428
        %462 = vmatprep.subr.bf16.mxu0 %v426
        %463 = vmatpush1.bf16.msra.mxu0 %v425
        %464 = vmatprep.subr.bf16.mxu0 %v423
        %465 = vmatpush1.bf16.msra.mxu0 %v422
        %466 = vmatprep.subr.bf16.mxu0 %v420
        %467 = vmatpush1.bf16.msra.mxu0 %v419
        %468 = vmatprep.subr.bf16.mxu0 %v417
        %469 = vmatpush1.bf16.msra.mxu0 %v416
        %470 = vmatprep.subr.bf16.mxu0 %v414
        %471 = vmatpush1.bf16.msra.mxu0 %v413
        %472 = vmatprep.subr.bf16.mxu0 %v411
        %473 = vmatpush1.bf16.msra.mxu0 %v410
        %474 = vmatprep.subr.bf16.mxu0 0
        %475 = vmatpush2.bf16.msra.mxu0 0
        %476 = vmatprep.subr.bf16.mxu0 0
        %477 = vmatpush2.bf16.msra.mxu0 0
        %478 = vmatprep.subr.bf16.mxu0 0
        %479 = vmatpush2.bf16.msra.mxu0 0
        %480 = vmatprep.subr.bf16.mxu0 0
        %481 = vmatpush2.bf16.msra.mxu0 0
        %482 = vmatprep.subr.bf16.mxu0 0
        %483 = vmatpush2.bf16.msra.mxu0 0
        %484 = vmatprep.subr.bf16.mxu0 0
        %485 = vmatpush2.bf16.msra.mxu0 0
        %486 = vmatprep.subr.bf16.mxu0 0
        %487 = vmatpush2.bf16.msra.mxu0 0
        %488 = vmatprep.subr.bf16.mxu0 0
        %489 = vmatpush2.bf16.msra.mxu0 0
        %490 = vmatprep.mubr.bf16.mxu0 0
        %491 = vmatmul.mubr.bf16.gmra.mxu0 %v328
        %v492 = vpop.f32.mrf.mxu0
        %v493 = vadd.f32 %v312, %v492
        %v494 = vpop.f32.mrf.mxu0
        %v495 = vadd.f32 %v316, %v494
        %v496 = vpop.f32.mrf.mxu0
        %v497 = vadd.f32 %v312, %v496
        %v498 = vpop.f32.mrf.mxu0
        %v499 = vadd.f32 %v316, %v498
        %500 = vdwg.mxu0
        %501 = vmatprep.subr.bf16.mxu0 0
        %502 = vmatpush1.bf16.msra.mxu0 %v433
        %503 = vmatprep.subr.bf16.mxu0 0
        %504 = vmatpush1.bf16.msra.mxu0 %v430
        %505 = vmatprep.subr.bf16.mxu0 0
        %506 = vmatpush1.bf16.msra.mxu0 %v427
        %507 = vmatprep.subr.bf16.mxu0 0
        %508 = vmatpush1.bf16.msra.mxu0 %v424
        %509 = vmatprep.subr.bf16.mxu0 0
        %510 = vmatpush1.bf16.msra.mxu0 %v421
        %511 = vmatprep.subr.bf16.mxu0 0
        %512 = vmatpush1.bf16.msra.mxu0 %v418
        %513 = vmatprep.subr.bf16.mxu0 0
        %514 = vmatpush1.bf16.msra.mxu0 %v415
        %515 = vmatprep.subr.bf16.mxu0 0
        %516 = vmatpush1.bf16.msra.mxu0 %v412
        %517 = vmatprep.subr.bf16.mxu0 0
        %518 = vmatpush2.bf16.msra.mxu0 0
        %519 = vmatprep.subr.bf16.mxu0 0
        %520 = vmatpush2.bf16.msra.mxu0 0
        %521 = vmatprep.subr.bf16.mxu0 0
        %522 = vmatpush2.bf16.msra.mxu0 0
        %523 = vmatprep.subr.bf16.mxu0 0
        %524 = vmatpush2.bf16.msra.mxu0 0
        %525 = vmatprep.subr.bf16.mxu0 0
        %526 = vmatpush2.bf16.msra.mxu0 0
        %527 = vmatprep.subr.bf16.mxu0 0
        %528 = vmatpush2.bf16.msra.mxu0 0
        %529 = vmatprep.subr.bf16.mxu0 0
        %530 = vmatpush2.bf16.msra.mxu0 0
        %531 = vmatprep.subr.bf16.mxu0 0
        %532 = vmatpush2.bf16.msra.mxu0 0
        %533 = vmatprep.mubr.bf16.mxu0 0
        %534 = vmatmul.mubr.bf16.gmra.mxu0 %v328
        %v535 = vpop.f32.mrf.mxu0
        %v536 = vadd.f32 %v320, %v535
        %v537 = vpop.f32.mrf.mxu0
        %v538 = vpop.f32.mrf.mxu0
        %v539 = vadd.f32 %v320, %v538
        %v540 = vpop.f32.mrf.mxu0
        %541 = vdwg.mxu0
        %v542 = vpack.c.bf16 %v497, %v493
        %v543 = vpack.c.bf16 %v499, %v495
        %v544 = vpack.c.bf16 %v539, %v536
        %v548 = vunpack.c.l.b16 %v542
        %v549 = vunpack.c.l.b16 %v543
        %v550 = vunpack.c.l.b16 %v544
        %v551 = vunpack.c.h.b16 %v542
        %v552 = vunpack.c.h.b16 %v543
        %v553 = vunpack.c.h.b16 %v544
        %v554 = vpack.c.b16 %v549, %v548
        %v555 = vpack.c.b16 %v550, %v550
        %v556 = vpack.c.b16 %v552, %v551
        %v557 = vpack.c.b16 %v553, %v553
        %562 = vst [vmem:[#allocation2] sm:$0xff] %v554
        %563 = vst [vmem:[#allocation2 + $0x8] sm:$0xf] %v555
        %564 = vst [vmem:[#allocation2 + $0xc] sm:$0xff] %v556
        %565 = vst [vmem:[#allocation2 + $0x14] sm:$0xf] %v557
        %v566 = vld [vmem:[#allocation2] sm:$0xf]
        %v567 = vld [vmem:[#allocation2 + $0xc] sm:$0xf]
        %vm568 = vcmask 257024
        %569 = vst.msk [vmem:[#allocation3] sm:$0xf] %vm568, %v566
        %570 = vst.msk [vmem:[#allocation3 + $0x4] sm:$0xf] %vm568, %v567
        %v571 = vld [vmem:[#allocation2 + $0x4] sm:$0xf]
        %v572 = vld [vmem:[#allocation2 + $0x10] sm:$0xf]
        %573 = vst.msk [vmem:[#allocation4] sm:$0xf] %vm568, %v571
        %574 = vst.msk [vmem:[#allocation4 + $0x4] sm:$0xf] %vm568, %v572
        %v575 = vld [vmem:[#allocation2 + $0x8] sm:$0xf]
        %v576 = vld [vmem:[#allocation2 + $0x14] sm:$0xf]
        %577 = vst.msk [vmem:[#allocation5] sm:$0xf] %vm568, %v575
        %578 = vst.msk [vmem:[#allocation5 + $0x4] sm:$0xf] %vm568, %v576
        %v579 = vld [vmem:[#allocation2] sm:$0xf]
        %v580 = vld [vmem:[#allocation2 + $0xc] sm:$0xf]
        %583 = vrot.lane.b32.xlu0 %v579, 96
        %v584 = vpop.permute.xlu0 %583
        %585 = vrot.lane.b32.xlu0 %v580, 96
        %v586 = vpop.permute.xlu0 %585
        %s589 = scalar_lea.vmem [#allocation3], 8
        %590 = vst.msk [vmem:[%s589] sm:$0xf] %vm568, %v584
        %591 = vst.msk [vmem:[%s589 + $0x4] sm:$0xf] %vm568, %v586
        %v592 = vld [vmem:[#allocation2 + $0x4] sm:$0xf]
        %v593 = vld [vmem:[#allocation2 + $0x10] sm:$0xf]
        %596 = vrot.lane.b32.xlu0 %v592, 96
        %v597 = vpop.permute.xlu0 %596
        %598 = vrot.lane.b32.xlu0 %v593, 96
        %v599 = vpop.permute.xlu0 %598
        %s602 = scalar_lea.vmem [#allocation4], 8
        %603 = vst.msk [vmem:[%s602] sm:$0xf] %vm568, %v597
        %604 = vst.msk [vmem:[%s602 + $0x4] sm:$0xf] %vm568, %v599
        %v605 = vld [vmem:[#allocation2 + $0x8] sm:$0xf]
        %v606 = vld [vmem:[#allocation2 + $0x14] sm:$0xf]
        %609 = vrot.lane.b32.xlu0 %v605, 96
        %v610 = vpop.permute.xlu0 %609
        %611 = vrot.lane.b32.xlu0 %v606, 96
        %v612 = vpop.permute.xlu0 %611
        %s615 = scalar_lea.vmem [#allocation5], 8
        %616 = vst.msk [vmem:[%s615] sm:$0xf] %vm568, %v610
        %617 = vst.msk [vmem:[%s615 + $0x4] sm:$0xf] %vm568, %v612
        %v618 = vld [vmem:[#allocation2] sm:$0xf]
        %v619 = vld [vmem:[#allocation2 + $0xc] sm:$0xf]
        %622 = vrot.lane.b32.xlu0 %v618, 64
        %v623 = vpop.permute.xlu0 %622
        %624 = vrot.lane.b32.xlu0 %v619, 64
        %v625 = vpop.permute.xlu0 %624
        %s628 = scalar_lea.vmem [#allocation3], 16
        %629 = vst.msk [vmem:[%s628] sm:$0xf] %vm568, %v623
        %630 = vst.msk [vmem:[%s628 + $0x4] sm:$0xf] %vm568, %v625
        %v631 = vld [vmem:[#allocation2 + $0x4] sm:$0xf]
        %v632 = vld [vmem:[#allocation2 + $0x10] sm:$0xf]
        %635 = vrot.lane.b32.xlu0 %v631, 64
        %v636 = vpop.permute.xlu0 %635
        %637 = vrot.lane.b32.xlu0 %v632, 64
        %v638 = vpop.permute.xlu0 %637
        %s641 = scalar_lea.vmem [#allocation4], 16
        %642 = vst.msk [vmem:[%s641] sm:$0xf] %vm568, %v636
        %643 = vst.msk [vmem:[%s641 + $0x4] sm:$0xf] %vm568, %v638
        %v644 = vld [vmem:[#allocation2 + $0x8] sm:$0xf]
        %v645 = vld [vmem:[#allocation2 + $0x14] sm:$0xf]
        %648 = vrot.lane.b32.xlu0 %v644, 64
        %v649 = vpop.permute.xlu0 %648
        %650 = vrot.lane.b32.xlu0 %v645, 64
        %v651 = vpop.permute.xlu0 %650
        %s654 = scalar_lea.vmem [#allocation5], 16
        %655 = vst.msk [vmem:[%s654] sm:$0xf] %vm568, %v649
        %656 = vst.msk [vmem:[%s654 + $0x4] sm:$0xf] %vm568, %v651
        %v657 = vld [vmem:[#allocation2] sm:$0xf]
        %v658 = vld [vmem:[#allocation2 + $0xc] sm:$0xf]
        %661 = vrot.lane.b32.xlu0 %v657, 32
        %v662 = vpop.permute.xlu0 %661
        %663 = vrot.lane.b32.xlu0 %v658, 32
        %v664 = vpop.permute.xlu0 %663
        %s667 = scalar_lea.vmem [#allocation3], 24
        %668 = vst.msk [vmem:[%s667] sm:$0xf] %vm568, %v662
        %669 = vst.msk [vmem:[%s667 + $0x4] sm:$0xf] %vm568, %v664
        %v670 = vld [vmem:[#allocation2 + $0x4] sm:$0xf]
        %v671 = vld [vmem:[#allocation2 + $0x10] sm:$0xf]
        %674 = vrot.lane.b32.xlu0 %v670, 32
        %v675 = vpop.permute.xlu0 %674
        %676 = vrot.lane.b32.xlu0 %v671, 32
        %v677 = vpop.permute.xlu0 %676
        %s680 = scalar_lea.vmem [#allocation4], 24
        %681 = vst.msk [vmem:[%s680] sm:$0xf] %vm568, %v675
        %682 = vst.msk [vmem:[%s680 + $0x4] sm:$0xf] %vm568, %v677
        %v683 = vld [vmem:[#allocation2 + $0x8] sm:$0xf]
        %v684 = vld [vmem:[#allocation2 + $0x14] sm:$0xf]
        %687 = vrot.lane.b32.xlu0 %v683, 32
        %v688 = vpop.permute.xlu0 %687
        %689 = vrot.lane.b32.xlu0 %v684, 32
        %v690 = vpop.permute.xlu0 %689
        %s693 = scalar_lea.vmem [#allocation5], 24
        %694 = vst.msk [vmem:[%s693] sm:$0xf] %vm568, %v688
        %695 = vst.msk [vmem:[%s693 + $0x4] sm:$0xf] %vm568, %v690
        %v696 = vld [vmem:[#allocation3] sm:$0xf]
        %v697 = vld [vmem:[#allocation3 + $0x4] sm:$0xf]
        %v698 = vld [vmem:[#allocation3 + $0x8] sm:$0xf]
        %v699 = vld [vmem:[#allocation3 + $0xc] sm:$0xf]
        %v700 = vld [vmem:[#allocation3 + $0x10] sm:$0xf]
        %v701 = vld [vmem:[#allocation3 + $0x14] sm:$0xf]
        %v702 = vld [vmem:[#allocation3 + $0x18] sm:$0xf]
        %v703 = vld [vmem:[#allocation3 + $0x1c] sm:$0xf]
        %v704 = vld [vmem:[#allocation4] sm:$0xf]
        %v705 = vld [vmem:[#allocation4 + $0x4] sm:$0xf]
        %v706 = vld [vmem:[#allocation4 + $0x8] sm:$0xf]
        %v707 = vld [vmem:[#allocation4 + $0xc] sm:$0xf]
        %v708 = vld [vmem:[#allocation4 + $0x10] sm:$0xf]
        %v709 = vld [vmem:[#allocation4 + $0x14] sm:$0xf]
        %v710 = vld [vmem:[#allocation4 + $0x18] sm:$0xf]
        %v711 = vld [vmem:[#allocation4 + $0x1c] sm:$0xf]
        %v712 = vld [vmem:[#allocation5] sm:$0xf]
        %v713 = vld [vmem:[#allocation5 + $0x4] sm:$0xf]
        %v714 = vld [vmem:[#allocation5 + $0x8] sm:$0xf]
        %v715 = vld [vmem:[#allocation5 + $0xc] sm:$0xf]
        %v716 = vld [vmem:[#allocation5 + $0x10] sm:$0xf]
        %v717 = vld [vmem:[#allocation5 + $0x14] sm:$0xf]
        %v718 = vld [vmem:[#allocation5 + $0x18] sm:$0xf]
        %v719 = vld [vmem:[#allocation5 + $0x1c] sm:$0xf]
        %v722 = vunpack.c.l.b16 %v696
        %v723 = vunpack.c.l.b16 %v697
        %v724 = vpack.c.b16 %v723, %v722
        %v727 = vunpack.c.l.b16 %v704
        %v728 = vunpack.c.l.b16 %v705
        %v729 = vpack.c.b16 %v728, %v727
        %vm730 = vcmask 261120
        %v732 = vsel %vm730, %v724, 0
        %v735 = vsel %vm730, %v729, 0
        %737 = vmatprep.subr.bf16.mxu0 0
        %738 = vmatpush1.bf16.xpose.msra.mxu0 0
        %739 = vmatprep.subr.bf16.mxu0 0
        %740 = vmatpush1.bf16.xpose.msra.mxu0 0
        %741 = vmatprep.subr.bf16.mxu0 0
        %742 = vmatpush1.bf16.xpose.msra.mxu0 0
        %743 = vmatprep.subr.bf16.mxu0 0
        %744 = vmatpush1.bf16.xpose.msra.mxu0 0
        %745 = vmatprep.subr.bf16.mxu0 0
        %746 = vmatpush1.bf16.xpose.msra.mxu0 0
        %747 = vmatprep.subr.bf16.mxu0 0
        %748 = vmatpush1.bf16.xpose.msra.mxu0 0
        %749 = vmatprep.subr.bf16.mxu0 0
        %750 = vmatpush1.bf16.xpose.msra.mxu0 0
        %751 = vmatprep.subr.bf16.mxu0 0
        %752 = vmatpush1.bf16.xpose.msra.mxu0 %v735
        %753 = vmatprep.subr.bf16.mxu0 0
        %754 = vmatpush2.bf16.xpose.msra.mxu0 0
        %755 = vmatprep.subr.bf16.mxu0 0
        %756 = vmatpush2.bf16.xpose.msra.mxu0 0
        %757 = vmatprep.subr.bf16.mxu0 0
        %758 = vmatpush2.bf16.xpose.msra.mxu0 0
        %759 = vmatprep.subr.bf16.mxu0 0
        %760 = vmatpush2.bf16.xpose.msra.mxu0 0
        %761 = vmatprep.subr.bf16.mxu0 0
        %762 = vmatpush2.bf16.xpose.msra.mxu0 0
        %763 = vmatprep.subr.bf16.mxu0 0
        %764 = vmatpush2.bf16.xpose.msra.mxu0 0
        %765 = vmatprep.subr.bf16.mxu0 0
        %766 = vmatpush2.bf16.xpose.msra.mxu0 0
        %767 = vmatprep.subr.bf16.mxu0 0
        %768 = vmatpush2.bf16.xpose.msra.mxu0 0
        %769 = vmatprep.mubr.bf16.mxu0 0
        %770 = vmatmul.mubr.bf16.gmra.mxu0 %v732
        %v771 = vpop.f32.mrf.mxu0
        %v772 = vadd.f32 0.0, %v771
        %v773 = vpop.f32.mrf.mxu0
        %v774 = vpop.f32.mrf.mxu0
        %v775 = vadd.f32 0.0, %v774
        %v776 = vpop.f32.mrf.mxu0
        %777 = vdwg.mxu0
        %v780 = vunpack.c.l.b16 %v698
        %v781 = vunpack.c.l.b16 %v699
        %v782 = vpack.c.b16 %v781, %v780
        %v785 = vunpack.c.l.b16 %v706
        %v786 = vunpack.c.l.b16 %v707
        %v787 = vpack.c.b16 %v786, %v785
        %v789 = vsel %vm730, %v782, 0
        %v792 = vsel %vm730, %v787, 0
        %794 = vmatprep.subr.bf16.mxu0 0
        %795 = vmatpush1.bf16.xpose.msra.mxu0 0
        %796 = vmatprep.subr.bf16.mxu0 0
        %797 = vmatpush1.bf16.xpose.msra.mxu0 0
        %798 = vmatprep.subr.bf16.mxu0 0
        %799 = vmatpush1.bf16.xpose.msra.mxu0 0
        %800 = vmatprep.subr.bf16.mxu0 0
        %801 = vmatpush1.bf16.xpose.msra.mxu0 0
        %802 = vmatprep.subr.bf16.mxu0 0
        %803 = vmatpush1.bf16.xpose.msra.mxu0 0
        %804 = vmatprep.subr.bf16.mxu0 0
        %805 = vmatpush1.bf16.xpose.msra.mxu0 0
        %806 = vmatprep.subr.bf16.mxu0 0
        %807 = vmatpush1.bf16.xpose.msra.mxu0 0
        %808 = vmatprep.subr.bf16.mxu0 0
        %809 = vmatpush1.bf16.xpose.msra.mxu0 %v792
        %810 = vmatprep.subr.bf16.mxu0 0
        %811 = vmatpush2.bf16.xpose.msra.mxu0 0
        %812 = vmatprep.subr.bf16.mxu0 0
        %813 = vmatpush2.bf16.xpose.msra.mxu0 0
        %814 = vmatprep.subr.bf16.mxu0 0
        %815 = vmatpush2.bf16.xpose.msra.mxu0 0
        %816 = vmatprep.subr.bf16.mxu0 0
        %817 = vmatpush2.bf16.xpose.msra.mxu0 0
        %818 = vmatprep.subr.bf16.mxu0 0
        %819 = vmatpush2.bf16.xpose.msra.mxu0 0
        %820 = vmatprep.subr.bf16.mxu0 0
        %821 = vmatpush2.bf16.xpose.msra.mxu0 0
        %822 = vmatprep.subr.bf16.mxu0 0
        %823 = vmatpush2.bf16.xpose.msra.mxu0 0
        %824 = vmatprep.subr.bf16.mxu0 0
        %825 = vmatpush2.bf16.xpose.msra.mxu0 0
        %826 = vmatprep.mubr.bf16.mxu0 0
        %827 = vmatmul.mubr.bf16.gmra.mxu0 %v789
        %v828 = vpop.f32.mrf.mxu0
        %v829 = vadd.f32 0.0, %v828
        %v830 = vpop.f32.mrf.mxu0
        %v831 = vpop.f32.mrf.mxu0
        %v832 = vadd.f32 0.0, %v831
        %v833 = vpop.f32.mrf.mxu0
        %834 = vdwg.mxu0
        %v837 = vunpack.c.l.b16 %v700
        %v838 = vunpack.c.l.b16 %v701
        %v839 = vpack.c.b16 %v838, %v837
        %v842 = vunpack.c.l.b16 %v708
        %v843 = vunpack.c.l.b16 %v709
        %v844 = vpack.c.b16 %v843, %v842
        %v846 = vsel %vm730, %v839, 0
        %v849 = vsel %vm730, %v844, 0
        %851 = vmatprep.subr.bf16.mxu0 0
        %852 = vmatpush1.bf16.xpose.msra.mxu0 0
        %853 = vmatprep.subr.bf16.mxu0 0
        %854 = vmatpush1.bf16.xpose.msra.mxu0 0
        %855 = vmatprep.subr.bf16.mxu0 0
        %856 = vmatpush1.bf16.xpose.msra.mxu0 0
        %857 = vmatprep.subr.bf16.mxu0 0
        %858 = vmatpush1.bf16.xpose.msra.mxu0 0
        %859 = vmatprep.subr.bf16.mxu0 0
        %860 = vmatpush1.bf16.xpose.msra.mxu0 0
        %861 = vmatprep.subr.bf16.mxu0 0
        %862 = vmatpush1.bf16.xpose.msra.mxu0 0
        %863 = vmatprep.subr.bf16.mxu0 0
        %864 = vmatpush1.bf16.xpose.msra.mxu0 0
        %865 = vmatprep.subr.bf16.mxu0 0
        %866 = vmatpush1.bf16.xpose.msra.mxu0 %v849
        %867 = vmatprep.subr.bf16.mxu0 0
        %868 = vmatpush2.bf16.xpose.msra.mxu0 0
        %869 = vmatprep.subr.bf16.mxu0 0
        %870 = vmatpush2.bf16.xpose.msra.mxu0 0
        %871 = vmatprep.subr.bf16.mxu0 0
        %872 = vmatpush2.bf16.xpose.msra.mxu0 0
        %873 = vmatprep.subr.bf16.mxu0 0
        %874 = vmatpush2.bf16.xpose.msra.mxu0 0
        %875 = vmatprep.subr.bf16.mxu0 0
        %876 = vmatpush2.bf16.xpose.msra.mxu0 0
        %877 = vmatprep.subr.bf16.mxu0 0
        %878 = vmatpush2.bf16.xpose.msra.mxu0 0
        %879 = vmatprep.subr.bf16.mxu0 0
        %880 = vmatpush2.bf16.xpose.msra.mxu0 0
        %881 = vmatprep.subr.bf16.mxu0 0
        %882 = vmatpush2.bf16.xpose.msra.mxu0 0
        %883 = vmatprep.mubr.bf16.mxu0 0
        %884 = vmatmul.mubr.bf16.gmra.mxu0 %v846
        %v885 = vpop.f32.mrf.mxu0
        %v886 = vadd.f32 0.0, %v885
        %v887 = vpop.f32.mrf.mxu0
        %v888 = vpop.f32.mrf.mxu0
        %v889 = vadd.f32 0.0, %v888
        %v890 = vpop.f32.mrf.mxu0
        %891 = vdwg.mxu0
        %v894 = vunpack.c.l.b16 %v702
        %v895 = vunpack.c.l.b16 %v703
        %v896 = vpack.c.b16 %v895, %v894
        %v899 = vunpack.c.l.b16 %v710
        %v900 = vunpack.c.l.b16 %v711
        %v901 = vpack.c.b16 %v900, %v899
        %v903 = vsel %vm730, %v896, 0
        %v906 = vsel %vm730, %v901, 0
        %908 = vmatprep.subr.bf16.mxu0 0
        %909 = vmatpush1.bf16.xpose.msra.mxu0 0
        %910 = vmatprep.subr.bf16.mxu0 0
        %911 = vmatpush1.bf16.xpose.msra.mxu0 0
        %912 = vmatprep.subr.bf16.mxu0 0
        %913 = vmatpush1.bf16.xpose.msra.mxu0 0
        %914 = vmatprep.subr.bf16.mxu0 0
        %915 = vmatpush1.bf16.xpose.msra.mxu0 0
        %916 = vmatprep.subr.bf16.mxu0 0
        %917 = vmatpush1.bf16.xpose.msra.mxu0 0
        %918 = vmatprep.subr.bf16.mxu0 0
        %919 = vmatpush1.bf16.xpose.msra.mxu0 0
        %920 = vmatprep.subr.bf16.mxu0 0
        %921 = vmatpush1.bf16.xpose.msra.mxu0 0
        %922 = vmatprep.subr.bf16.mxu0 0
        %923 = vmatpush1.bf16.xpose.msra.mxu0 %v906
        %924 = vmatprep.subr.bf16.mxu0 0
        %925 = vmatpush2.bf16.xpose.msra.mxu0 0
        %926 = vmatprep.subr.bf16.mxu0 0
        %927 = vmatpush2.bf16.xpose.msra.mxu0 0
        %928 = vmatprep.subr.bf16.mxu0 0
        %929 = vmatpush2.bf16.xpose.msra.mxu0 0
        %930 = vmatprep.subr.bf16.mxu0 0
        %931 = vmatpush2.bf16.xpose.msra.mxu0 0
        %932 = vmatprep.subr.bf16.mxu0 0
        %933 = vmatpush2.bf16.xpose.msra.mxu0 0
        %934 = vmatprep.subr.bf16.mxu0 0
        %935 = vmatpush2.bf16.xpose.msra.mxu0 0
        %936 = vmatprep.subr.bf16.mxu0 0
        %937 = vmatpush2.bf16.xpose.msra.mxu0 0
        %938 = vmatprep.subr.bf16.mxu0 0
        %939 = vmatpush2.bf16.xpose.msra.mxu0 0
        %940 = vmatprep.mubr.bf16.mxu0 0
        %941 = vmatmul.mubr.bf16.gmra.mxu0 %v903
        %v942 = vpop.f32.mrf.mxu0
        %v943 = vadd.f32 0.0, %v942
        %v944 = vpop.f32.mrf.mxu0
        %v945 = vpop.f32.mrf.mxu0
        %v946 = vadd.f32 0.0, %v945
        %v947 = vpop.f32.mrf.mxu0
        %948 = vdwg.mxu0
        %vm949 = vcmask 130048
        %v950 = vsel %vm949, %v772, -inf
        %951 = vmax.xlane.f32.xlu0 %v950
        %v952 = vpop.xlane.xlu0 %951
        %v953 = vsel %vm949, %v775, -inf
        %954 = vmax.xlane.f32.xlu0 %v953
        %v955 = vpop.xlane.xlu0 %954
        %v956 = vsel %vm949, %v829, -inf
        %957 = vmax.xlane.f32.xlu0 %v956
        %v958 = vpop.xlane.xlu0 %957
        %v959 = vsel %vm949, %v832, -inf
        %960 = vmax.xlane.f32.xlu0 %v959
        %v961 = vpop.xlane.xlu0 %960
        %v962 = vsel %vm949, %v886, -inf
        %963 = vmax.xlane.f32.xlu0 %v962
        %v964 = vpop.xlane.xlu0 %963
        %v965 = vsel %vm949, %v889, -inf
        %966 = vmax.xlane.f32.xlu0 %v965
        %v967 = vpop.xlane.xlu0 %966
        %v968 = vsel %vm949, %v943, -inf
        %969 = vmax.xlane.f32.xlu0 %v968
        %v970 = vpop.xlane.xlu0 %969
        %v971 = vsel %vm949, %v946, -inf
        %972 = vmax.xlane.f32.xlu0 %v971
        %v973 = vpop.xlane.xlu0 %972
        %v974 = vsub.f32 %v772, %v952
        %v975 = vsub.f32 %v775, %v955
        %v976 = vsub.f32 %v829, %v958
        %v977 = vsub.f32 %v832, %v961
        %v978 = vsub.f32 %v886, %v964
        %v979 = vsub.f32 %v889, %v967
        %v980 = vsub.f32 %v943, %v970
        %v981 = vsub.f32 %v946, %v973
        %v982 = vmul.f32 %v974, 1.442695
        %v983 = vpow.pop %v982
        %v984 = vmul.f32 %v975, 1.442695
        %v985 = vpow.pop %v984
        %v986 = vmul.f32 %v976, 1.442695
        %v987 = vpow.pop %v986
        %v988 = vmul.f32 %v977, 1.442695
        %v989 = vpow.pop %v988
        %v990 = vmul.f32 %v978, 1.442695
        %v991 = vpow.pop %v990
        %v992 = vmul.f32 %v979, 1.442695
        %v993 = vpow.pop %v992
        %v994 = vmul.f32 %v980, 1.442695
        %v995 = vpow.pop %v994
        %v996 = vmul.f32 %v981, 1.442695
        %v997 = vpow.pop %v996
        %v998 = vsel %vm949, %v983, 0.0
        %999 = vadd.xlane.f32.xlu0 %v998
        %v1000 = vpop.xlane.xlu0 %999
        %v1001 = vsel %vm949, %v985, 0.0
        %1002 = vadd.xlane.f32.xlu0 %v1001
        %v1003 = vpop.xlane.xlu0 %1002
        %v1004 = vsel %vm949, %v987, 0.0
        %1005 = vadd.xlane.f32.xlu0 %v1004
        %v1006 = vpop.xlane.xlu0 %1005
        %v1007 = vsel %vm949, %v989, 0.0
        %1008 = vadd.xlane.f32.xlu0 %v1007
        %v1009 = vpop.xlane.xlu0 %1008
        %v1010 = vsel %vm949, %v991, 0.0
        %1011 = vadd.xlane.f32.xlu0 %v1010
        %v1012 = vpop.xlane.xlu0 %1011
        %v1013 = vsel %vm949, %v993, 0.0
        %1014 = vadd.xlane.f32.xlu0 %v1013
        %v1015 = vpop.xlane.xlu0 %1014
        %v1016 = vsel %vm949, %v995, 0.0
        %1017 = vadd.xlane.f32.xlu0 %v1016
        %v1018 = vpop.xlane.xlu0 %1017
        %v1019 = vsel %vm949, %v997, 0.0
        %1020 = vadd.xlane.f32.xlu0 %v1019
        %v1021 = vpop.xlane.xlu0 %1020
        %v1022 = vrcp.pop %v1000
        %v1023 = vrcp.pop %v1003
        %v1024 = vrcp.pop %v1006
        %v1025 = vrcp.pop %v1009
        %v1026 = vrcp.pop %v1012
        %v1027 = vrcp.pop %v1015
        %v1028 = vrcp.pop %v1018
        %v1029 = vrcp.pop %v1021
        %v1030 = vmul.f32 %v983, %v1022
        %v1031 = vmul.f32 %v985, %v1023
        %v1032 = vmul.f32 %v987, %v1024
        %v1033 = vmul.f32 %v989, %v1025
        %v1034 = vmul.f32 %v991, %v1026
        %v1035 = vmul.f32 %v993, %v1027
        %v1036 = vmul.f32 %v995, %v1028
        %v1037 = vmul.f32 %v997, %v1029
        %v1038 = vpack.c.bf16 %v1031, %v1030
        %v1039 = vpack.c.bf16 %v1033, %v1032
        %v1040 = vpack.c.bf16 %v1035, %v1034
        %v1041 = vpack.c.bf16 %v1037, %v1036
        %v1044 = vunpack.c.l.b16 %v712
        %v1045 = vunpack.c.l.b16 %v713
        %v1046 = vpack.c.b16 %v1045, %v1044
        %v1049 = vsel %vm949, %v1038, 0
        %1051 = vmatprep.subr.bf16.mxu0 0
        %1052 = vmatpush1.bf16.msra.mxu0 0
        %1053 = vmatprep.subr.bf16.mxu0 0
        %1054 = vmatpush1.bf16.msra.mxu0 0
        %1055 = vmatprep.subr.bf16.mxu0 0
        %1056 = vmatpush1.bf16.msra.mxu0 0
        %1057 = vmatprep.subr.bf16.mxu0 0
        %1058 = vmatpush1.bf16.msra.mxu0 0
        %1059 = vmatprep.subr.bf16.mxu0 0
        %1060 = vmatpush1.bf16.msra.mxu0 0
        %1061 = vmatprep.subr.bf16.mxu0 0
        %1062 = vmatpush1.bf16.msra.mxu0 0
        %1063 = vmatprep.subr.bf16.mxu0 0
        %1064 = vmatpush1.bf16.msra.mxu0 0
        %1065 = vmatprep.subr.bf16.mxu0 0
        %1066 = vmatpush1.bf16.msra.mxu0 %v1046
        %1067 = vmatprep.subr.bf16.mxu0 0
        %1068 = vmatpush2.bf16.msra.mxu0 0
        %1069 = vmatprep.subr.bf16.mxu0 0
        %1070 = vmatpush2.bf16.msra.mxu0 0
        %1071 = vmatprep.subr.bf16.mxu0 0
        %1072 = vmatpush2.bf16.msra.mxu0 0
        %1073 = vmatprep.subr.bf16.mxu0 0
        %1074 = vmatpush2.bf16.msra.mxu0 0
        %1075 = vmatprep.subr.bf16.mxu0 0
        %1076 = vmatpush2.bf16.msra.mxu0 0
        %1077 = vmatprep.subr.bf16.mxu0 0
        %1078 = vmatpush2.bf16.msra.mxu0 0
        %1079 = vmatprep.subr.bf16.mxu0 0
        %1080 = vmatpush2.bf16.msra.mxu0 0
        %1081 = vmatprep.subr.bf16.mxu0 0
        %1082 = vmatpush2.bf16.msra.mxu0 0
        %1083 = vmatprep.mubr.bf16.mxu0 0
        %1084 = vmatmul.mubr.bf16.gmra.mxu0 %v1049
        %v1085 = vpop.f32.mrf.mxu0
        %v1086 = vadd.f32 0.0, %v1085
        %v1087 = vpop.f32.mrf.mxu0
        %v1088 = vpop.f32.mrf.mxu0
        %v1089 = vadd.f32 0.0, %v1088
        %v1090 = vpop.f32.mrf.mxu0
        %1091 = vdwg.mxu0
        %v1094 = vunpack.c.l.b16 %v714
        %v1095 = vunpack.c.l.b16 %v715
        %v1096 = vpack.c.b16 %v1095, %v1094
        %v1099 = vsel %vm949, %v1039, 0
        %1101 = vmatprep.subr.bf16.mxu0 0
        %1102 = vmatpush1.bf16.msra.mxu0 0
        %1103 = vmatprep.subr.bf16.mxu0 0
        %1104 = vmatpush1.bf16.msra.mxu0 0
        %1105 = vmatprep.subr.bf16.mxu0 0
        %1106 = vmatpush1.bf16.msra.mxu0 0
        %1107 = vmatprep.subr.bf16.mxu0 0
        %1108 = vmatpush1.bf16.msra.mxu0 0
        %1109 = vmatprep.subr.bf16.mxu0 0
        %1110 = vmatpush1.bf16.msra.mxu0 0
        %1111 = vmatprep.subr.bf16.mxu0 0
        %1112 = vmatpush1.bf16.msra.mxu0 0
        %1113 = vmatprep.subr.bf16.mxu0 0
        %1114 = vmatpush1.bf16.msra.mxu0 0
        %1115 = vmatprep.subr.bf16.mxu0 0
        %1116 = vmatpush1.bf16.msra.mxu0 %v1096
        %1117 = vmatprep.subr.bf16.mxu0 0
        %1118 = vmatpush2.bf16.msra.mxu0 0
        %1119 = vmatprep.subr.bf16.mxu0 0
        %1120 = vmatpush2.bf16.msra.mxu0 0
        %1121 = vmatprep.subr.bf16.mxu0 0
        %1122 = vmatpush2.bf16.msra.mxu0 0
        %1123 = vmatprep.subr.bf16.mxu0 0
        %1124 = vmatpush2.bf16.msra.mxu0 0
        %1125 = vmatprep.subr.bf16.mxu0 0
        %1126 = vmatpush2.bf16.msra.mxu0 0
        %1127 = vmatprep.subr.bf16.mxu0 0
        %1128 = vmatpush2.bf16.msra.mxu0 0
        %1129 = vmatprep.subr.bf16.mxu0 0
        %1130 = vmatpush2.bf16.msra.mxu0 0
        %1131 = vmatprep.subr.bf16.mxu0 0
        %1132 = vmatpush2.bf16.msra.mxu0 0
        %1133 = vmatprep.mubr.bf16.mxu0 0
        %1134 = vmatmul.mubr.bf16.gmra.mxu0 %v1099
        %v1135 = vpop.f32.mrf.mxu0
        %v1136 = vadd.f32 0.0, %v1135
        %v1137 = vpop.f32.mrf.mxu0
        %v1138 = vpop.f32.mrf.mxu0
        %v1139 = vadd.f32 0.0, %v1138
        %v1140 = vpop.f32.mrf.mxu0
        %1141 = vdwg.mxu0
        %v1144 = vunpack.c.l.b16 %v716
        %v1145 = vunpack.c.l.b16 %v717
        %v1146 = vpack.c.b16 %v1145, %v1144
        %v1149 = vsel %vm949, %v1040, 0
        %1151 = vmatprep.subr.bf16.mxu0 0
        %1152 = vmatpush1.bf16.msra.mxu0 0
        %1153 = vmatprep.subr.bf16.mxu0 0
        %1154 = vmatpush1.bf16.msra.mxu0 0
        %1155 = vmatprep.subr.bf16.mxu0 0
        %1156 = vmatpush1.bf16.msra.mxu0 0
        %1157 = vmatprep.subr.bf16.mxu0 0
        %1158 = vmatpush1.bf16.msra.mxu0 0
        %1159 = vmatprep.subr.bf16.mxu0 0
        %1160 = vmatpush1.bf16.msra.mxu0 0
        %1161 = vmatprep.subr.bf16.mxu0 0
        %1162 = vmatpush1.bf16.msra.mxu0 0
        %1163 = vmatprep.subr.bf16.mxu0 0
        %1164 = vmatpush1.bf16.msra.mxu0 0
        %1165 = vmatprep.subr.bf16.mxu0 0
        %1166 = vmatpush1.bf16.msra.mxu0 %v1146
        %1167 = vmatprep.subr.bf16.mxu0 0
        %1168 = vmatpush2.bf16.msra.mxu0 0
        %1169 = vmatprep.subr.bf16.mxu0 0
        %1170 = vmatpush2.bf16.msra.mxu0 0
        %1171 = vmatprep.subr.bf16.mxu0 0
        %1172 = vmatpush2.bf16.msra.mxu0 0
        %1173 = vmatprep.subr.bf16.mxu0 0
        %1174 = vmatpush2.bf16.msra.mxu0 0
        %1175 = vmatprep.subr.bf16.mxu0 0
        %1176 = vmatpush2.bf16.msra.mxu0 0
        %1177 = vmatprep.subr.bf16.mxu0 0
        %1178 = vmatpush2.bf16.msra.mxu0 0
        %1179 = vmatprep.subr.bf16.mxu0 0
        %1180 = vmatpush2.bf16.msra.mxu0 0
        %1181 = vmatprep.subr.bf16.mxu0 0
        %1182 = vmatpush2.bf16.msra.mxu0 0
        %1183 = vmatprep.mubr.bf16.mxu0 0
        %1184 = vmatmul.mubr.bf16.gmra.mxu0 %v1149
        %v1185 = vpop.f32.mrf.mxu0
        %v1186 = vadd.f32 0.0, %v1185
        %v1187 = vpop.f32.mrf.mxu0
        %v1188 = vpop.f32.mrf.mxu0
        %v1189 = vadd.f32 0.0, %v1188
        %v1190 = vpop.f32.mrf.mxu0
        %1191 = vdwg.mxu0
        %v1194 = vunpack.c.l.b16 %v718
        %v1195 = vunpack.c.l.b16 %v719
        %v1196 = vpack.c.b16 %v1195, %v1194
        %v1199 = vsel %vm949, %v1041, 0
        %1201 = vmatprep.subr.bf16.mxu0 0
        %1202 = vmatpush1.bf16.msra.mxu0 0
        %1203 = vmatprep.subr.bf16.mxu0 0
        %1204 = vmatpush1.bf16.msra.mxu0 0
        %1205 = vmatprep.subr.bf16.mxu0 0
        %1206 = vmatpush1.bf16.msra.mxu0 0
        %1207 = vmatprep.subr.bf16.mxu0 0
        %1208 = vmatpush1.bf16.msra.mxu0 0
        %1209 = vmatprep.subr.bf16.mxu0 0
        %1210 = vmatpush1.bf16.msra.mxu0 0
        %1211 = vmatprep.subr.bf16.mxu0 0
        %1212 = vmatpush1.bf16.msra.mxu0 0
        %1213 = vmatprep.subr.bf16.mxu0 0
        %1214 = vmatpush1.bf16.msra.mxu0 0
        %1215 = vmatprep.subr.bf16.mxu0 0
        %1216 = vmatpush1.bf16.msra.mxu0 %v1196
        %1217 = vmatprep.subr.bf16.mxu0 0
        %1218 = vmatpush2.bf16.msra.mxu0 0
        %1219 = vmatprep.subr.bf16.mxu0 0
        %1220 = vmatpush2.bf16.msra.mxu0 0
        %1221 = vmatprep.subr.bf16.mxu0 0
        %1222 = vmatpush2.bf16.msra.mxu0 0
        %1223 = vmatprep.subr.bf16.mxu0 0
        %1224 = vmatpush2.bf16.msra.mxu0 0
        %1225 = vmatprep.subr.bf16.mxu0 0
        %1226 = vmatpush2.bf16.msra.mxu0 0
        %1227 = vmatprep.subr.bf16.mxu0 0
        %1228 = vmatpush2.bf16.msra.mxu0 0
        %1229 = vmatprep.subr.bf16.mxu0 0
        %1230 = vmatpush2.bf16.msra.mxu0 0
        %1231 = vmatprep.subr.bf16.mxu0 0
        %1232 = vmatpush2.bf16.msra.mxu0 0
        %1233 = vmatprep.mubr.bf16.mxu0 0
        %1234 = vmatmul.mubr.bf16.gmra.mxu0 %v1199
        %v1235 = vpop.f32.mrf.mxu0
        %v1236 = vadd.f32 0.0, %v1235
        %v1237 = vpop.f32.mrf.mxu0
        %v1238 = vpop.f32.mrf.mxu0
        %v1239 = vadd.f32 0.0, %v1238
        %v1240 = vpop.f32.mrf.mxu0
        %1241 = vdwg.mxu0
        %v1242 = vpack.c.bf16 %v1089, %v1086
        %v1244 = vunpack.c.l.b16 %v1242
        %v1245 = vunpack.c.h.b16 %v1242
        %v1246 = vpack.c.b16 %v1244, %v1244
        %v1247 = vpack.c.b16 %v1245, %v1245
        %1250 = vst.msk [vmem:[#allocation6] sm:$0xf] %vm568, %v1246
        %1251 = vst.msk [vmem:[#allocation6 + $0x4] sm:$0xf] %vm568, %v1247
        %v1252 = vpack.c.bf16 %v1139, %v1136
        %v1254 = vunpack.c.l.b16 %v1252
        %v1255 = vunpack.c.h.b16 %v1252
        %v1256 = vpack.c.b16 %v1254, %v1254
        %v1257 = vpack.c.b16 %v1255, %v1255
        %1258 = vrot.lane.b32.xlu0 %v1256, 32
        %v1259 = vpop.permute.xlu0 %1258
        %1260 = vrot.lane.b32.xlu0 %v1257, 32
        %v1261 = vpop.permute.xlu0 %1260
        %vm1264 = vcmask 519424
        %1265 = vst.msk [vmem:[#allocation6] sm:$0xf] %vm1264, %v1259
        %1266 = vst.msk [vmem:[#allocation6 + $0x4] sm:$0xf] %vm1264, %v1261
        %v1267 = vpack.c.bf16 %v1189, %v1186
        %v1269 = vunpack.c.l.b16 %v1267
        %v1270 = vunpack.c.h.b16 %v1267
        %v1271 = vpack.c.b16 %v1269, %v1269
        %v1272 = vpack.c.b16 %v1270, %v1270
        %1273 = vrot.lane.b32.xlu0 %v1271, 64
        %v1274 = vpop.permute.xlu0 %1273
        %1275 = vrot.lane.b32.xlu0 %v1272, 64
        %v1276 = vpop.permute.xlu0 %1275
        %vm1279 = vcmask 781824
        %1280 = vst.msk [vmem:[#allocation6] sm:$0xf] %vm1279, %v1274
        %1281 = vst.msk [vmem:[#allocation6 + $0x4] sm:$0xf] %vm1279, %v1276
        %v1282 = vpack.c.bf16 %v1239, %v1236
        %v1284 = vunpack.c.l.b16 %v1282
        %v1285 = vunpack.c.h.b16 %v1282
        %v1286 = vpack.c.b16 %v1284, %v1284
        %v1287 = vpack.c.b16 %v1285, %v1285
        %1288 = vrot.lane.b32.xlu0 %v1286, 96
        %v1289 = vpop.permute.xlu0 %1288
        %1290 = vrot.lane.b32.xlu0 %v1287, 96
        %v1291 = vpop.permute.xlu0 %1290
        %vm1294 = vcmask 1044224
        %1295 = vst.msk [vmem:[#allocation6] sm:$0xf] %vm1294, %v1289
        %1296 = vst.msk [vmem:[#allocation6 + $0x4] sm:$0xf] %vm1294, %v1291
        %v1297 = vld [vmem:[#allocation6] sm:$0xf]
        %v1298 = vld [vmem:[#allocation6 + $0x4] sm:$0xf]
        %v1299 = vld [vmem:[#allocation12] sm:$0xf]
        %v1300 = vld [vmem:[#allocation12 + $0x4] sm:$0xf]
        %v1301 = vld [vmem:[#allocation12 + $0x8] sm:$0xf]
        %v1302 = vld [vmem:[#allocation12 + $0xc] sm:$0xf]
        %v1303 = vld [vmem:[#allocation12 + $0x10] sm:$0xf]
        %v1304 = vld [vmem:[#allocation12 + $0x14] sm:$0xf]
        %v1305 = vld [vmem:[#allocation12 + $0x18] sm:$0xf]
        %v1306 = vld [vmem:[#allocation12 + $0x1c] sm:$0xf]
        %v1307 = vld [vmem:[#allocation12 + $0x20] sm:$0xf]
        %v1308 = vld [vmem:[#allocation12 + $0x24] sm:$0xf]
        %v1309 = vld [vmem:[#allocation12 + $0x28] sm:$0xf]
        %v1310 = vld [vmem:[#allocation12 + $0x2c] sm:$0xf]
        %v1311 = vld [vmem:[#allocation12 + $0x30] sm:$0xf]
        %v1312 = vld [vmem:[#allocation12 + $0x34] sm:$0xf]
        %v1313 = vld [vmem:[#allocation12 + $0x38] sm:$0xf]
        %v1314 = vld [vmem:[#allocation12 + $0x3c] sm:$0xf]
        %v1315 = vld [vmem:[%s4] sm:$0x1]
        %v1317 = vlaneseq
        %v1318 = vshrl.u32 %v1317, 7
        %v1319 = vsub.s32 0, %v1318
        %v1320 = vrot.slane %v1315, %v1319
        %v1324 = vunpack.c.l.b16 %v1297
        %v1325 = vunpack.c.l.b16 %v1298
        %v1326 = vpack.c.b16 %v1325, %v1324
        %v1344 = vunpack.c.l.b16 %v1299
        %v1345 = vunpack.c.l.b16 %v1300
        %v1346 = vunpack.c.l.b16 %v1301
        %v1347 = vunpack.c.l.b16 %v1302
        %v1348 = vunpack.c.l.b16 %v1303
        %v1349 = vunpack.c.l.b16 %v1304
        %v1350 = vunpack.c.l.b16 %v1305
        %v1351 = vunpack.c.l.b16 %v1306
        %v1352 = vunpack.c.l.b16 %v1307
        %v1353 = vunpack.c.l.b16 %v1308
        %v1354 = vunpack.c.l.b16 %v1309
        %v1355 = vunpack.c.l.b16 %v1310
        %v1356 = vunpack.c.l.b16 %v1311
        %v1357 = vunpack.c.l.b16 %v1312
        %v1358 = vunpack.c.l.b16 %v1313
        %v1359 = vunpack.c.l.b16 %v1314
        %v1360 = vpack.c.b16 %v1345, %v1344
        %v1361 = vpack.c.b16 %v1347, %v1346
        %v1362 = vpack.c.b16 %v1349, %v1348
        %v1363 = vpack.c.b16 %v1351, %v1350
        %v1364 = vpack.c.b16 %v1353, %v1352
        %v1365 = vpack.c.b16 %v1355, %v1354
        %v1366 = vpack.c.b16 %v1357, %v1356
        %v1367 = vpack.c.b16 %v1359, %v1358
        %1376 = vmatprep.subr.bf16.mxu0 0
        %1377 = vmatpush1.bf16.msra.mxu0 %v1367
        %1378 = vmatprep.subr.bf16.mxu0 0
        %1379 = vmatpush1.bf16.msra.mxu0 %v1366
        %1380 = vmatprep.subr.bf16.mxu0 0
        %1381 = vmatpush1.bf16.msra.mxu0 %v1365
        %1382 = vmatprep.subr.bf16.mxu0 0
        %1383 = vmatpush1.bf16.msra.mxu0 %v1364
        %1384 = vmatprep.subr.bf16.mxu0 0
        %1385 = vmatpush1.bf16.msra.mxu0 %v1363
        %1386 = vmatprep.subr.bf16.mxu0 0
        %1387 = vmatpush1.bf16.msra.mxu0 %v1362
        %1388 = vmatprep.subr.bf16.mxu0 0
        %1389 = vmatpush1.bf16.msra.mxu0 %v1361
        %1390 = vmatprep.subr.bf16.mxu0 0
        %1391 = vmatpush1.bf16.msra.mxu0 %v1360
        %1392 = vmatprep.subr.bf16.mxu0 0
        %1393 = vmatpush2.bf16.msra.mxu0 0
        %1394 = vmatprep.subr.bf16.mxu0 0
        %1395 = vmatpush2.bf16.msra.mxu0 0
        %1396 = vmatprep.subr.bf16.mxu0 0
        %1397 = vmatpush2.bf16.msra.mxu0 0
        %1398 = vmatprep.subr.bf16.mxu0 0
        %1399 = vmatpush2.bf16.msra.mxu0 0
        %1400 = vmatprep.subr.bf16.mxu0 0
        %1401 = vmatpush2.bf16.msra.mxu0 0
        %1402 = vmatprep.subr.bf16.mxu0 0
        %1403 = vmatpush2.bf16.msra.mxu0 0
        %1404 = vmatprep.subr.bf16.mxu0 0
        %1405 = vmatpush2.bf16.msra.mxu0 0
        %1406 = vmatprep.subr.bf16.mxu0 0
        %1407 = vmatpush2.bf16.msra.mxu0 0
        %1408 = vmatprep.mubr.bf16.mxu0 0
        %1409 = vmatmul.mubr.bf16.gmra.mxu0 %v1326
        %v1410 = vpop.f32.mrf.mxu0
        %v1411 = vadd.f32 %v1320, %v1410
        %v1412 = vpop.f32.mrf.mxu0
        %v1413 = vpop.f32.mrf.mxu0
        %v1414 = vadd.f32 %v1320, %v1413
        %v1415 = vpop.f32.mrf.mxu0
        %1416 = vdwg.mxu0
        %1417 = vst [vmem:[%s271] sm:$0xff] %v1411
        %1418 = vst [vmem:[%s271 + $0x8] sm:$0xff] %v1414
        %s1419 = sand.u32 %s141, 1
        %s1420 = scalar_lea.sflag [#allocation9], %s1419
        %s1421 = sand.u32 %s141, 1
        %s1422 = smul.addr %s1421, 16
        %s1423 = scalar_lea.vmem [#allocation13], %s1422
        // Predicated region
        $region53: #{tpu_custom_call.1} parent=39 // pred_check
          %p1424 = pneg %p151
        $region54: #{tpu_custom_call.1} parent=39 // pred_check_branch
          %1426 = sbr.rel (%p1424) target = $region56
        $region55: #{tpu_custom_call.1} parent=39 // pred_region
          %s1428 = ssub.s32 256, 256
          %1429 = vsyncadd %s1420, %s1428
          %s1430 = smul.addr %s23, 2
          %s1431 = smul.addr %s1430, 128
          %s1432 = scalar_lea.hbm %s5, %s1431
          %s1433 = sshll.u32 %s1423, 4
          %s1434 = int_to_ptr.vmem [resolvable:$true] %s1433
          %1439 = dma.vmem_to_hbm [thread:$0]  %s1434, 256, %s1432, %s1420, 128, 128, 8
        $region56: #{tpu_custom_call.1} parent=39 // pred_fallthru
          _
      $region40: #{tpu_custom_call.1} parent=5 // pred_fallthru
        _
      %p1440 = scmp.le.s32.totalorder 2, %s18
      // Predicated region
      $region57: #{tpu_custom_call.1} parent=5 // pred_check
        %p1441 = pneg %p1440
      $region58: #{tpu_custom_call.1} parent=5 // pred_check_branch
        %1443 = sbr.rel (%p1441) target = $region60
      $region59: #{tpu_custom_call.1} parent=5 // pred_region
        %s1444 = ssub.s32 %s18, 2
        // Predicated region
        $region61: #{tpu_custom_call.1} parent=59 // pred_check
          %p1445 = pneg %p157
        $region62: #{tpu_custom_call.1} parent=59 // pred_check_branch
          %1447 = sbr.rel (%p1445) target = $region64
        $region63: #{tpu_custom_call.1} parent=59 // pred_region
          %s1448 = sand.u32 %s142, 1
          %s1449 = scalar_lea.sflag [#allocation9], %s1448
          %s1450 = sand.u32 %s142, 1
          %s1451 = smul.addr %s1450, 16
          %s1452 = scalar_lea.vmem [#allocation13], %s1451
          %1453 = dma.done %s1449, 256
        $region64: #{tpu_custom_call.1} parent=59 // pred_fallthru
          _
      $region60: #{tpu_custom_call.1} parent=5 // pred_fallthru
        _
    $region6: #{tpu_custom_call.1} parent=1 // loop_footer
      %s22 = sadd.s32 1, %s18
    $region7: #{tpu_custom_call.1} parent=1 // loop_footer_branch
      %17 = sbr.rel target = $region3
    $region8: #{tpu_custom_call.1} parent=1 // loop_exit
      _
    %1454 = vsyncpa [#allocation8], 1
    %s1455 = scalar_lea.sflag [#allocation8], 1
    %1456 = vsyncpa %s1455, 1
    %1457 = vsyncpa [#allocation11], 1
    %1458 = vsyncpa [#allocation9], 1
    %s1459 = scalar_lea.sflag [#allocation9], 1
    %1460 = vsyncpa %s1459, 1

</llo_original>
